<compile_context>
chip_gen: v5e
topology: v5e:2x2
jax: 0.10.0
libtpu: 0.0.40
codegen_flags: <defaults>
</compile_context>

<pallas_src>
import jax
import jax.numpy as jnp
from jax.experimental import pallas as pl
from jax.experimental.pallas import tpu as pltpu


# ----------------------------- fused BasicBlock kernel -----------------------------

def make_block_kernel(stride, Ho, Wo, Cin, Cout, has_proj):
    """One grid step = one image: conv1(+BN1+ReLU) -> conv2(+BN2) -> +shortcut -> ReLU."""
    s = stride
    M = Ho * Wo

    def conv3x3(tap, w_ref):
        # 3x3 conv as 9 shifted matmuls, f32 accumulation on the MXU.
        acc = None
        for kh in range(3):
            for kw in range(3):
                lhs = tap(kh, kw).reshape(M, -1)
                part = jnp.dot(lhs, w_ref[kh * 3 + kw],
                               preferred_element_type=jnp.float32)
                acc = part if acc is None else acc + part
        return acc                                              # (M, Cout) f32

    def kernel(*refs):
        if has_proj:
            xp_ref, w1_ref, b1_ref, w2_ref, b2_ref, ws_ref, bs_ref, o_ref, y1_ref = refs
        else:
            xp_ref, w1_ref, b1_ref, w2_ref, b2_ref, o_ref, y1_ref = refs

        # ---- conv1 (3x3, stride s, pad 1) + BN1 + ReLU -------------------------
        # Stride handled via the polyphase layout of xp_ref: tap (kh, kw) lives in
        # phase (kh%s, kw%s) at contiguous offset (kh//s, kw//s).
        def tap1(kh, kw):
            ph = (kh % s) * s + (kw % s)
            return xp_ref[ph, pl.ds(kh // s, Ho), pl.ds(kw // s, Wo), :]

        y1 = jnp.maximum(conv3x3(tap1, w1_ref) + b1_ref[...], 0.0)

        # y1 stays on-chip: halo'd (zero border) bf16 VMEM scratch feeds conv2.
        y1_ref[...] = jnp.zeros(y1_ref.shape, y1_ref.dtype)
        y1_ref[pl.ds(1, Ho), pl.ds(1, Wo), :] = (
            y1.astype(y1_ref.dtype).reshape(Ho, Wo, Cout))

        # ---- conv2 (3x3, stride 1, pad 1) + BN2 --------------------------------
        def tap2(kh, kw):
            return y1_ref[pl.ds(kh, Ho), pl.ds(kw, Wo), :]

        acc = conv3x3(tap2, w2_ref) + b2_ref[...]

        # ---- shortcut: residual read from the input block already in VMEM ------
        ph_sc = (1 % s) * s + (1 % s)       # original-x tap is padded coord 1 + s*i
        d_sc = 1 // s
        xs = xp_ref[ph_sc, pl.ds(d_sc, Ho), pl.ds(d_sc, Wo), :].reshape(M, Cin)
        if has_proj:
            acc += jnp.dot(xs, ws_ref[...],
                           preferred_element_type=jnp.float32) + bs_ref[...]
        else:
            acc += xs.astype(jnp.float32)

        o_ref[0] = jnp.maximum(acc, 0.0).reshape(Ho, Wo, Cout).astype(o_ref.dtype)

    return kernel


# ----------------------------- host-side glue ---------------------------------------

def fold_bn(gamma, beta, mean, var, eps=1e-5):
    scale = gamma / jnp.sqrt(var + eps)
    return scale, beta - mean * scale


def conv_w_to_taps(w_oihw):
    # (O, I, 3, 3) -> (9, I, O); tap (kh, kw) -> index kh*3 + kw.
    O = w_oihw.shape[0]
    return jnp.transpose(w_oihw, (2, 3, 1, 0)).reshape(9, -1, O)


def _phase_split(xpad, stride, Ho, Wo):
    """(N, Hp, Wp, C) -> (N*s*s, Hpp, Wpp, C).  s=1: pass-through.  s>1: polyphase
    split of the (already 1-pixel-padded) input so every in-kernel tap of the strided
    conv and the strided shortcut is a contiguous slice (no strided loads)."""
    if stride == 1:
        return xpad
    s = stride
    phases = [xpad[:, p::s, q::s, :][:, :Ho + 1, :Wo + 1, :]
              for p in range(s) for q in range(s)]
    xph = jnp.stack(phases, axis=1)                      # (N, s*s, Ho+1, Wo+1, C)
    return xph.reshape((xph.shape[0] * s * s,) + xph.shape[2:])


def basic_block_forward(x_nchw, params, stride):
    x = jnp.transpose(x_nchw, (0, 2, 3, 1))              # NCHW -> NHWC
    N, H, W, Cin = x.shape
    Cout = params["w1"].shape[0]
    s = stride
    Ho = (H + 2 - 3) // s + 1
    Wo = (W + 2 - 3) // s + 1
    has_proj = "ws" in params

    # Fold BN scales into the conv weights; kernels only add a bias.
    s1, b1 = fold_bn(*params["bn1"])
    s2, b2 = fold_bn(*params["bn2"])
    w1 = (conv_w_to_taps(params["w1"]) * s1).astype(jnp.bfloat16)   # (9, Cin, Cout)
    w2 = (conv_w_to_taps(params["w2"]) * s2).astype(jnp.bfloat16)   # (9, Cout, Cout)
    b1 = b1.reshape(1, Cout).astype(jnp.float32)
    b2 = b2.reshape(1, Cout).astype(jnp.float32)

    # Only host-side padding: a 1-pixel border (input-sized, NOT a 9x im2col tensor);
    # extra bottom/right rows only so every polyphase has a full Ho+1/Wo+1 extent.
    Hp = max(H + 2, s * (Ho + 1))
    Wp = max(W + 2, s * (Wo + 1))
    xpad = jnp.pad(x.astype(jnp.bfloat16),
                   ((0, 0), (1, Hp - H - 1), (1, Wp - W - 1), (0, 0)))
    xph = _phase_split(xpad, s, Ho, Wo)                  # (N*s*s, Hpp, Wpp, Cin)
    n_ph = s * s
    Hpp, Wpp = xph.shape[1], xph.shape[2]

    in_specs = [
        pl.BlockSpec((n_ph, Hpp, Wpp, Cin), lambda n: (n, 0, 0, 0)),
        # Small folded weights/biases: fully VMEM-resident (constant block index ->
        # fetched once, reused across the whole grid).
        pl.BlockSpec((9, Cin, Cout), lambda n: (0, 0, 0)),
        pl.BlockSpec((1, Cout), lambda n: (0, 0)),
        pl.BlockSpec((9, Cout, Cout), lambda n: (0, 0, 0)),
        pl.BlockSpec((1, Cout), lambda n: (0, 0)),
    ]
    args = [xph, w1, b1, w2, b2]
    if has_proj:
        ss, bs = fold_bn(*params["bns"])
        ws = (params["ws"][:, :, 0, 0].T * ss).astype(jnp.bfloat16)  # (Cin, Cout)
        bs = bs.reshape(1, Cout).astype(jnp.float32)
        in_specs += [pl.BlockSpec((Cin, Cout), lambda n: (0, 0)),
                     pl.BlockSpec((1, Cout), lambda n: (0, 0))]
        args += [ws, bs]

    # Explicit scoped-VMEM budget (double-buffered activation blocks + resident
    # weights + y1 scratch), generous but well under every generation's limit.
    blk_bytes = (2 * (n_ph * Hpp * Wpp * Cin * 2 + Ho * Wo * Cout * 4)
                 + 9 * (Cin + Cout) * Cout * 2
                 + (Ho + 2) * (Wo + 2) * Cout * 2)
    vmem_limit = int(min(max(4 * blk_bytes, 16 << 20), 32 << 20))

    kernel = make_block_kernel(s, Ho, Wo, Cin, Cout, has_proj)
    out = pl.pallas_call(
        kernel,
        out_shape=jax.ShapeDtypeStruct((N, Ho, Wo, Cout), jnp.float32),
        grid_spec=pltpu.PrefetchScalarGridSpec(
            num_scalar_prefetch=0,
            grid=(N,),
            in_specs=in_specs,
            out_specs=pl.BlockSpec((1, Ho, Wo, Cout), lambda n: (n, 0, 0, 0)),
            scratch_shapes=[pltpu.VMEM((Ho + 2, Wo + 2, Cout), jnp.bfloat16)],
        ),
        compiler_params=pltpu.CompilerParams(
            dimension_semantics=("parallel",),
            vmem_limit_bytes=vmem_limit),
    )(*args)

    return jnp.transpose(out, (0, 3, 1, 2))              # NHWC -> NCHW


# ----------------------------- pure-JAX reference (f32) -----------------------------

def _conv(x_nhwc, w_oihw, stride, pad):
    w = jnp.transpose(w_oihw, (2, 3, 1, 0))              # HWIO
    return jax.lax.conv_general_dilated(
        x_nhwc, w, (stride, stride), [(pad, pad), (pad, pad)],
        dimension_numbers=("NHWC", "HWIO", "NHWC"))


def ref_forward(x_nchw, params, stride):
    x = jnp.transpose(x_nchw, (0, 2, 3, 1)).astype(jnp.float32)
    s1, b1 = fold_bn(*params["bn1"])
    s2, b2 = fold_bn(*params["bn2"])
    y = jnp.maximum(_conv(x, params["w1"], stride, 1) * s1 + b1, 0.0)
    y = _conv(y, params["w2"], 1, 1) * s2 + b2
    if "ws" in params:
        ss, bs = fold_bn(*params["bns"])
        sc = _conv(x, params["ws"], stride, 0) * ss + bs
    else:
        sc = x
    return jnp.transpose(jnp.maximum(y + sc, 0.0), (0, 3, 1, 2))


# ----------------------------- param init ------------------------------------------

def init_bn(key, c):
    k1, k2, k3, k4 = jax.random.split(key, 4)
    gamma = 1.0 + 0.1 * jax.random.normal(k1, (c,), jnp.float32)
    beta = 0.1 * jax.random.normal(k2, (c,), jnp.float32)
    mean = 0.1 * jax.random.normal(k3, (c,), jnp.float32)
    var = jax.random.uniform(k4, (c,), jnp.float32, minval=0.5, maxval=1.5)
    return gamma, beta, mean, var


def init_params(key, cin, cout, stride):
    ks = jax.random.split(key, 6)
    p = {
        "w1": 0.1 * jax.random.normal(ks[0], (cout, cin, 3, 3), jnp.float32),
        "bn1": init_bn(ks[1], cout),
        "w2": 0.1 * jax.random.normal(ks[2], (cout, cout, 3, 3), jnp.float32),
        "bn2": init_bn(ks[3], cout),
    }
    if stride != 1 or cin != cout:
        p["ws"] = 0.1 * jax.random.normal(ks[4], (cout, cin, 1, 1), jnp.float32)
        p["bns"] = init_bn(ks[5], cout)
    return p


# ----------------------------- main --------------------------------------------------

if __name__ == "__main__":
    key = jax.random.PRNGKey(0)
    kx, kp1, kp2 = jax.random.split(key, 3)
    x = jax.random.normal(kx, (2, 4, 16, 16), jnp.float32)   # NCHW, like torch

    fwd = jax.jit(basic_block_forward, static_argnums=(2,))

    # Tolerance: matmuls use bf16 operands / f32 MXU accumulation; the f32 reference
    # stays faithful to the PyTorch module.
    TOL = dict(atol=3e-2, rtol=3e-2)

    # Case 1: projection shortcut (stride=2, channel change 4 -> 8)
    params1 = init_params(kp1, 4, 8, stride=2)
    out1 = jax.block_until_ready(fwd(x, params1, 2))
    ref1 = ref_forward(x, params1, 2)
    assert out1.shape == (2, 8, 8, 8)
    assert jnp.allclose(out1, ref1, **TOL), float(jnp.max(jnp.abs(out1 - ref1)))

    # Case 2: identity shortcut (stride=1, 4 -> 4)
    params2 = init_params(kp2, 4, 4, stride=1)
    out2 = jax.block_until_ready(fwd(x, params2, 1))
    ref2 = ref_forward(x, params2, 1)
    assert out2.shape == (2, 4, 16, 16)
    assert jnp.allclose(out2, ref2, **TOL), float(jnp.max(jnp.abs(out2 - ref2)))

    print("KERNEL_OK")
</pallas_src>

<mosaic_0001>
module attributes {stable_mosaic.version = 11 : i64} {
  func.func @kernel(%arg0: i32, %arg1: memref<4x9x9x4xbf16, #tpu.memory_space<vmem>>, %arg2: memref<9x4x8xbf16, #tpu.memory_space<vmem>>, %arg3: memref<1x8xf32, #tpu.memory_space<vmem>>, %arg4: memref<9x8x8xbf16, #tpu.memory_space<vmem>>, %arg5: memref<1x8xf32, #tpu.memory_space<vmem>>, %arg6: memref<4x8xbf16, #tpu.memory_space<vmem>>, %arg7: memref<1x8xf32, #tpu.memory_space<vmem>>, %arg8: memref<1x8x8x8xf32, #tpu.memory_space<vmem>>, %arg9: memref<10x10x8xbf16, #tpu.memory_space<vmem>>) attributes {dimension_semantics = [#tpu.dimension_semantics<parallel>], iteration_bounds = array<i64: 2>, scalar_prefetch = 0 : i64, scratch_operands = 1 : i64, tpu.core_type = #tpu.core_type<tc>, window_params = [{transform_indices = @transform_0, window_bounds = array<i64: 4, 9, 9, 4>}, {pipeline_mode = #tpu.pipeline_mode<synchronous>, transform_indices = @transform_1, window_bounds = array<i64: 9, 4, 8>}, {pipeline_mode = #tpu.pipeline_mode<synchronous>, transform_indices = @transform_2, window_bounds = array<i64: 1, 8>}, {pipeline_mode = #tpu.pipeline_mode<synchronous>, transform_indices = @transform_3, window_bounds = array<i64: 9, 8, 8>}, {pipeline_mode = #tpu.pipeline_mode<synchronous>, transform_indices = @transform_4, window_bounds = array<i64: 1, 8>}, {pipeline_mode = #tpu.pipeline_mode<synchronous>, transform_indices = @transform_5, window_bounds = array<i64: 4, 8>}, {pipeline_mode = #tpu.pipeline_mode<synchronous>, transform_indices = @transform_6, window_bounds = array<i64: 1, 8>}, {transform_indices = @transform_7, window_bounds = array<i64: 1, 8, 8, 8>}]} {
    %c0 = arith.constant 0 : index
    %c0_0 = arith.constant 0 : index
    %c0_1 = arith.constant 0 : index
    %c0_2 = arith.constant 0 : index
    %0 = vector.load %arg1[%c0, %c0_0, %c0_1, %c0_2] : memref<4x9x9x4xbf16, #tpu.memory_space<vmem>>, vector<1x8x8x4xbf16>
    %1 = vector.shape_cast %0 : vector<1x8x8x4xbf16> to vector<8x8x4xbf16>
    %2 = vector.shape_cast %1 : vector<8x8x4xbf16> to vector<64x4xbf16>
    %c0_3 = arith.constant 0 : index
    %c0_4 = arith.constant 0 : index
    %c0_5 = arith.constant 0 : index
    %3 = vector.load %arg2[%c0_3, %c0_4, %c0_5] : memref<9x4x8xbf16, #tpu.memory_space<vmem>>, vector<1x4x8xbf16>
    %4 = vector.shape_cast %3 : vector<1x4x8xbf16> to vector<4x8xbf16>
    %cst = arith.constant dense<0.000000e+00> : vector<64x8xf32>
    %5 = tpu.matmul %2, %4, %cst {dimension_numbers = #tpu.dot_dimension_numbers<[1], [0], [0], [1], [0, 0, 1, 1], [], []>} : vector<64x4xbf16>, vector<4x8xbf16>, vector<64x8xf32> -> vector<64x8xf32>
    %c1 = arith.constant 1 : index
    %c0_6 = arith.constant 0 : index
    %c0_7 = arith.constant 0 : index
    %c0_8 = arith.constant 0 : index
    %6 = vector.load %arg1[%c1, %c0_6, %c0_7, %c0_8] : memref<4x9x9x4xbf16, #tpu.memory_space<vmem>>, vector<1x8x8x4xbf16>
    %7 = vector.shape_cast %6 : vector<1x8x8x4xbf16> to vector<8x8x4xbf16>
    %8 = vector.shape_cast %7 : vector<8x8x4xbf16> to vector<64x4xbf16>
    %c1_9 = arith.constant 1 : index
    %c0_10 = arith.constant 0 : index
    %c0_11 = arith.constant 0 : index
    %9 = vector.load %arg2[%c1_9, %c0_10, %c0_11] : memref<9x4x8xbf16, #tpu.memory_space<vmem>>, vector<1x4x8xbf16>
    %10 = vector.shape_cast %9 : vector<1x4x8xbf16> to vector<4x8xbf16>
    %cst_12 = arith.constant dense<0.000000e+00> : vector<64x8xf32>
    %11 = tpu.matmul %8, %10, %cst_12 {dimension_numbers = #tpu.dot_dimension_numbers<[1], [0], [0], [1], [0, 0, 1, 1], [], []>} : vector<64x4xbf16>, vector<4x8xbf16>, vector<64x8xf32> -> vector<64x8xf32>
    %12 = arith.addf %5, %11 : vector<64x8xf32>
    %c0_13 = arith.constant 0 : index
    %c0_14 = arith.constant 0 : index
    %c1_15 = arith.constant 1 : index
    %c0_16 = arith.constant 0 : index
    %13 = vector.load %arg1[%c0_13, %c0_14, %c1_15, %c0_16] : memref<4x9x9x4xbf16, #tpu.memory_space<vmem>>, vector<1x8x8x4xbf16>
    %14 = vector.shape_cast %13 : vector<1x8x8x4xbf16> to vector<8x8x4xbf16>
    %15 = vector.shape_cast %14 : vector<8x8x4xbf16> to vector<64x4xbf16>
    %c2 = arith.constant 2 : index
    %c0_17 = arith.constant 0 : index
    %c0_18 = arith.constant 0 : index
    %16 = vector.load %arg2[%c2, %c0_17, %c0_18] : memref<9x4x8xbf16, #tpu.memory_space<vmem>>, vector<1x4x8xbf16>
    %17 = vector.shape_cast %16 : vector<1x4x8xbf16> to vector<4x8xbf16>
    %cst_19 = arith.constant dense<0.000000e+00> : vector<64x8xf32>
    %18 = tpu.matmul %15, %17, %cst_19 {dimension_numbers = #tpu.dot_dimension_numbers<[1], [0], [0], [1], [0, 0, 1, 1], [], []>} : vector<64x4xbf16>, vector<4x8xbf16>, vector<64x8xf32> -> vector<64x8xf32>
    %19 = arith.addf %12, %18 : vector<64x8xf32>
    %c2_20 = arith.constant 2 : index
    %c0_21 = arith.constant 0 : index
    %c0_22 = arith.constant 0 : index
    %c0_23 = arith.constant 0 : index
    %20 = vector.load %arg1[%c2_20, %c0_21, %c0_22, %c0_23] : memref<4x9x9x4xbf16, #tpu.memory_space<vmem>>, vector<1x8x8x4xbf16>
    %21 = vector.shape_cast %20 : vector<1x8x8x4xbf16> to vector<8x8x4xbf16>
    %22 = vector.shape_cast %21 : vector<8x8x4xbf16> to vector<64x4xbf16>
    %c3 = arith.constant 3 : index
    %c0_24 = arith.constant 0 : index
    %c0_25 = arith.constant 0 : index
    %23 = vector.load %arg2[%c3, %c0_24, %c0_25] : memref<9x4x8xbf16, #tpu.memory_space<vmem>>, vector<1x4x8xbf16>
    %24 = vector.shape_cast %23 : vector<1x4x8xbf16> to vector<4x8xbf16>
    %cst_26 = arith.constant dense<0.000000e+00> : vector<64x8xf32>
    %25 = tpu.matmul %22, %24, %cst_26 {dimension_numbers = #tpu.dot_dimension_numbers<[1], [0], [0], [1], [0, 0, 1, 1], [], []>} : vector<64x4xbf16>, vector<4x8xbf16>, vector<64x8xf32> -> vector<64x8xf32>
    %26 = arith.addf %19, %25 : vector<64x8xf32>
    %c3_27 = arith.constant 3 : index
    %c0_28 = arith.constant 0 : index
    %c0_29 = arith.constant 0 : index
    %c0_30 = arith.constant 0 : index
    %27 = vector.load %arg1[%c3_27, %c0_28, %c0_29, %c0_30] : memref<4x9x9x4xbf16, #tpu.memory_space<vmem>>, vector<1x8x8x4xbf16>
    %28 = vector.shape_cast %27 : vector<1x8x8x4xbf16> to vector<8x8x4xbf16>
    %29 = vector.shape_cast %28 : vector<8x8x4xbf16> to vector<64x4xbf16>
    %c4 = arith.constant 4 : index
    %c0_31 = arith.constant 0 : index
    %c0_32 = arith.constant 0 : index
    %30 = vector.load %arg2[%c4, %c0_31, %c0_32] : memref<9x4x8xbf16, #tpu.memory_space<vmem>>, vector<1x4x8xbf16>
    %31 = vector.shape_cast %30 : vector<1x4x8xbf16> to vector<4x8xbf16>
    %cst_33 = arith.constant dense<0.000000e+00> : vector<64x8xf32>
    %32 = tpu.matmul %29, %31, %cst_33 {dimension_numbers = #tpu.dot_dimension_numbers<[1], [0], [0], [1], [0, 0, 1, 1], [], []>} : vector<64x4xbf16>, vector<4x8xbf16>, vector<64x8xf32> -> vector<64x8xf32>
    %33 = arith.addf %26, %32 : vector<64x8xf32>
    %c2_34 = arith.constant 2 : index
    %c0_35 = arith.constant 0 : index
    %c1_36 = arith.constant 1 : index
    %c0_37 = arith.constant 0 : index
    %34 = vector.load %arg1[%c2_34, %c0_35, %c1_36, %c0_37] : memref<4x9x9x4xbf16, #tpu.memory_space<vmem>>, vector<1x8x8x4xbf16>
    %35 = vector.shape_cast %34 : vector<1x8x8x4xbf16> to vector<8x8x4xbf16>
    %36 = vector.shape_cast %35 : vector<8x8x4xbf16> to vector<64x4xbf16>
    %c5 = arith.constant 5 : index
    %c0_38 = arith.constant 0 : index
    %c0_39 = arith.constant 0 : index
    %37 = vector.load %arg2[%c5, %c0_38, %c0_39] : memref<9x4x8xbf16, #tpu.memory_space<vmem>>, vector<1x4x8xbf16>
    %38 = vector.shape_cast %37 : vector<1x4x8xbf16> to vector<4x8xbf16>
    %cst_40 = arith.constant dense<0.000000e+00> : vector<64x8xf32>
    %39 = tpu.matmul %36, %38, %cst_40 {dimension_numbers = #tpu.dot_dimension_numbers<[1], [0], [0], [1], [0, 0, 1, 1], [], []>} : vector<64x4xbf16>, vector<4x8xbf16>, vector<64x8xf32> -> vector<64x8xf32>
    %40 = arith.addf %33, %39 : vector<64x8xf32>
    %c0_41 = arith.constant 0 : index
    %c1_42 = arith.constant 1 : index
    %c0_43 = arith.constant 0 : index
    %c0_44 = arith.constant 0 : index
    %41 = vector.load %arg1[%c0_41, %c1_42, %c0_43, %c0_44] : memref<4x9x9x4xbf16, #tpu.memory_space<vmem>>, vector<1x8x8x4xbf16>
    %42 = vector.shape_cast %41 : vector<1x8x8x4xbf16> to vector<8x8x4xbf16>
    %43 = vector.shape_cast %42 : vector<8x8x4xbf16> to vector<64x4xbf16>
    %c6 = arith.constant 6 : index
    %c0_45 = arith.constant 0 : index
    %c0_46 = arith.constant 0 : index
    %44 = vector.load %arg2[%c6, %c0_45, %c0_46] : memref<9x4x8xbf16, #tpu.memory_space<vmem>>, vector<1x4x8xbf16>
    %45 = vector.shape_cast %44 : vector<1x4x8xbf16> to vector<4x8xbf16>
    %cst_47 = arith.constant dense<0.000000e+00> : vector<64x8xf32>
    %46 = tpu.matmul %43, %45, %cst_47 {dimension_numbers = #tpu.dot_dimension_numbers<[1], [0], [0], [1], [0, 0, 1, 1], [], []>} : vector<64x4xbf16>, vector<4x8xbf16>, vector<64x8xf32> -> vector<64x8xf32>
    %47 = arith.addf %40, %46 : vector<64x8xf32>
    %c1_48 = arith.constant 1 : index
    %c1_49 = arith.constant 1 : index
    %c0_50 = arith.constant 0 : index
    %c0_51 = arith.constant 0 : index
    %48 = vector.load %arg1[%c1_48, %c1_49, %c0_50, %c0_51] : memref<4x9x9x4xbf16, #tpu.memory_space<vmem>>, vector<1x8x8x4xbf16>
    %49 = vector.shape_cast %48 : vector<1x8x8x4xbf16> to vector<8x8x4xbf16>
    %50 = vector.shape_cast %49 : vector<8x8x4xbf16> to vector<64x4xbf16>
    %c7 = arith.constant 7 : index
    %c0_52 = arith.constant 0 : index
    %c0_53 = arith.constant 0 : index
    %51 = vector.load %arg2[%c7, %c0_52, %c0_53] : memref<9x4x8xbf16, #tpu.memory_space<vmem>>, vector<1x4x8xbf16>
    %52 = vector.shape_cast %51 : vector<1x4x8xbf16> to vector<4x8xbf16>
    %cst_54 = arith.constant dense<0.000000e+00> : vector<64x8xf32>
    %53 = tpu.matmul %50, %52, %cst_54 {dimension_numbers = #tpu.dot_dimension_numbers<[1], [0], [0], [1], [0, 0, 1, 1], [], []>} : vector<64x4xbf16>, vector<4x8xbf16>, vector<64x8xf32> -> vector<64x8xf32>
    %54 = arith.addf %47, %53 : vector<64x8xf32>
    %c0_55 = arith.constant 0 : index
    %c1_56 = arith.constant 1 : index
    %c1_57 = arith.constant 1 : index
    %c0_58 = arith.constant 0 : index
    %55 = vector.load %arg1[%c0_55, %c1_56, %c1_57, %c0_58] : memref<4x9x9x4xbf16, #tpu.memory_space<vmem>>, vector<1x8x8x4xbf16>
    %56 = vector.shape_cast %55 : vector<1x8x8x4xbf16> to vector<8x8x4xbf16>
    %57 = vector.shape_cast %56 : vector<8x8x4xbf16> to vector<64x4xbf16>
    %c8 = arith.constant 8 : index
    %c0_59 = arith.constant 0 : index
    %c0_60 = arith.constant 0 : index
    %58 = vector.load %arg2[%c8, %c0_59, %c0_60] : memref<9x4x8xbf16, #tpu.memory_space<vmem>>, vector<1x4x8xbf16>
    %59 = vector.shape_cast %58 : vector<1x4x8xbf16> to vector<4x8xbf16>
    %cst_61 = arith.constant dense<0.000000e+00> : vector<64x8xf32>
    %60 = tpu.matmul %57, %59, %cst_61 {dimension_numbers = #tpu.dot_dimension_numbers<[1], [0], [0], [1], [0, 0, 1, 1], [], []>} : vector<64x4xbf16>, vector<4x8xbf16>, vector<64x8xf32> -> vector<64x8xf32>
    %61 = arith.addf %54, %60 : vector<64x8xf32>
    %c0_62 = arith.constant 0 : index
    %c0_63 = arith.constant 0 : index
    %62 = vector.load %arg3[%c0_62, %c0_63] : memref<1x8xf32, #tpu.memory_space<vmem>>, vector<1x8xf32>
    %63 = vector.broadcast %62 : vector<1x8xf32> to vector<64x8xf32>
    %64 = arith.addf %61, %63 : vector<64x8xf32>
    %cst_64 = arith.constant 0.000000e+00 : f32
    %65 = vector.broadcast %cst_64 : f32 to vector<64x8xf32>
    %66 = arith.maximumf %64, %65 : vector<64x8xf32>
    %cst_65 = arith.constant 0.000000e+00 : bf16
    %67 = vector.broadcast %cst_65 : bf16 to vector<10x10x8xbf16>
    %c0_66 = arith.constant 0 : index
    %c0_67 = arith.constant 0 : index
    %c0_68 = arith.constant 0 : index
    %68 = vector.load %arg9[%c0_66, %c0_67, %c0_68] : memref<10x10x8xbf16, #tpu.memory_space<vmem>>, vector<10x10x8xbf16>
    tpu.vector_store %arg9[%c0_66, %c0_67, %c0_68], %67 {strides = array<i32>} : memref<10x10x8xbf16, #tpu.memory_space<vmem>>, vector<10x10x8xbf16>,
    %69 = arith.truncf %66 : vector<64x8xf32> to vector<64x8xbf16>
    %70 = vector.shape_cast %69 : vector<64x8xbf16> to vector<8x8x8xbf16>
    %c1_69 = arith.constant 1 : index
    %c1_70 = arith.constant 1 : index
    %c0_71 = arith.constant 0 : index
    %71 = vector.load %arg9[%c1_69, %c1_70, %c0_71] : memref<10x10x8xbf16, #tpu.memory_space<vmem>>, vector<8x8x8xbf16>
    tpu.vector_store %arg9[%c1_69, %c1_70, %c0_71], %70 {strides = array<i32>} : memref<10x10x8xbf16, #tpu.memory_space<vmem>>, vector<8x8x8xbf16>,
    %c0_72 = arith.constant 0 : index
    %c0_73 = arith.constant 0 : index
    %c0_74 = arith.constant 0 : index
    %72 = vector.load %arg9[%c0_72, %c0_73, %c0_74] : memref<10x10x8xbf16, #tpu.memory_space<vmem>>, vector<8x8x8xbf16>
    %73 = vector.shape_cast %72 : vector<8x8x8xbf16> to vector<64x8xbf16>
    %c0_75 = arith.constant 0 : index
    %c0_76 = arith.constant 0 : index
    %c0_77 = arith.constant 0 : index
    %74 = vector.load %arg4[%c0_75, %c0_76, %c0_77] : memref<9x8x8xbf16, #tpu.memory_space<vmem>>, vector<1x8x8xbf16>
    %75 = vector.shape_cast %74 : vector<1x8x8xbf16> to vector<8x8xbf16>
    %cst_78 = arith.constant dense<0.000000e+00> : vector<64x8xf32>
    %76 = tpu.matmul %73, %75, %cst_78 {dimension_numbers = #tpu.dot_dimension_numbers<[1], [0], [0], [1], [0, 0, 1, 1], [], []>} : vector<64x8xbf16>, vector<8x8xbf16>, vector<64x8xf32> -> vector<64x8xf32>
    %c0_79 = arith.constant 0 : index
    %c1_80 = arith.constant 1 : index
    %c0_81 = arith.constant 0 : index
    %77 = vector.load %arg9[%c0_79, %c1_80, %c0_81] : memref<10x10x8xbf16, #tpu.memory_space<vmem>>, vector<8x8x8xbf16>
    %78 = vector.shape_cast %77 : vector<8x8x8xbf16> to vector<64x8xbf16>
    %c1_82 = arith.constant 1 : index
    %c0_83 = arith.constant 0 : index
    %c0_84 = arith.constant 0 : index
    %79 = vector.load %arg4[%c1_82, %c0_83, %c0_84] : memref<9x8x8xbf16, #tpu.memory_space<vmem>>, vector<1x8x8xbf16>
    %80 = vector.shape_cast %79 : vector<1x8x8xbf16> to vector<8x8xbf16>
    %cst_85 = arith.constant dense<0.000000e+00> : vector<64x8xf32>
    %81 = tpu.matmul %78, %80, %cst_85 {dimension_numbers = #tpu.dot_dimension_numbers<[1], [0], [0], [1], [0, 0, 1, 1], [], []>} : vector<64x8xbf16>, vector<8x8xbf16>, vector<64x8xf32> -> vector<64x8xf32>
    %82 = arith.addf %76, %81 : vector<64x8xf32>
    %c0_86 = arith.constant 0 : index
    %c2_87 = arith.constant 2 : index
    %c0_88 = arith.constant 0 : index
    %83 = vector.load %arg9[%c0_86, %c2_87, %c0_88] : memref<10x10x8xbf16, #tpu.memory_space<vmem>>, vector<8x8x8xbf16>
    %84 = vector.shape_cast %83 : vector<8x8x8xbf16> to vector<64x8xbf16>
    %c2_89 = arith.constant 2 : index
    %c0_90 = arith.constant 0 : index
    %c0_91 = arith.constant 0 : index
    %85 = vector.load %arg4[%c2_89, %c0_90, %c0_91] : memref<9x8x8xbf16, #tpu.memory_space<vmem>>, vector<1x8x8xbf16>
    %86 = vector.shape_cast %85 : vector<1x8x8xbf16> to vector<8x8xbf16>
    %cst_92 = arith.constant dense<0.000000e+00> : vector<64x8xf32>
    %87 = tpu.matmul %84, %86, %cst_92 {dimension_numbers = #tpu.dot_dimension_numbers<[1], [0], [0], [1], [0, 0, 1, 1], [], []>} : vector<64x8xbf16>, vector<8x8xbf16>, vector<64x8xf32> -> vector<64x8xf32>
    %88 = arith.addf %82, %87 : vector<64x8xf32>
    %c1_93 = arith.constant 1 : index
    %c0_94 = arith.constant 0 : index
    %c0_95 = arith.constant 0 : index
    %89 = vector.load %arg9[%c1_93, %c0_94, %c0_95] : memref<10x10x8xbf16, #tpu.memory_space<vmem>>, vector<8x8x8xbf16>
    %90 = vector.shape_cast %89 : vector<8x8x8xbf16> to vector<64x8xbf16>
    %c3_96 = arith.constant 3 : index
    %c0_97 = arith.constant 0 : index
    %c0_98 = arith.constant 0 : index
    %91 = vector.load %arg4[%c3_96, %c0_97, %c0_98] : memref<9x8x8xbf16, #tpu.memory_space<vmem>>, vector<1x8x8xbf16>
    %92 = vector.shape_cast %91 : vector<1x8x8xbf16> to vector<8x8xbf16>
    %cst_99 = arith.constant dense<0.000000e+00> : vector<64x8xf32>
    %93 = tpu.matmul %90, %92, %cst_99 {dimension_numbers = #tpu.dot_dimension_numbers<[1], [0], [0], [1], [0, 0, 1, 1], [], []>} : vector<64x8xbf16>, vector<8x8xbf16>, vector<64x8xf32> -> vector<64x8xf32>
    %94 = arith.addf %88, %93 : vector<64x8xf32>
    %c1_100 = arith.constant 1 : index
    %c1_101 = arith.constant 1 : index
    %c0_102 = arith.constant 0 : index
    %95 = vector.load %arg9[%c1_100, %c1_101, %c0_102] : memref<10x10x8xbf16, #tpu.memory_space<vmem>>, vector<8x8x8xbf16>
    %96 = vector.shape_cast %95 : vector<8x8x8xbf16> to vector<64x8xbf16>
    %c4_103 = arith.constant 4 : index
    %c0_104 = arith.constant 0 : index
    %c0_105 = arith.constant 0 : index
    %97 = vector.load %arg4[%c4_103, %c0_104, %c0_105] : memref<9x8x8xbf16, #tpu.memory_space<vmem>>, vector<1x8x8xbf16>
    %98 = vector.shape_cast %97 : vector<1x8x8xbf16> to vector<8x8xbf16>
    %cst_106 = arith.constant dense<0.000000e+00> : vector<64x8xf32>
    %99 = tpu.matmul %96, %98, %cst_106 {dimension_numbers = #tpu.dot_dimension_numbers<[1], [0], [0], [1], [0, 0, 1, 1], [], []>} : vector<64x8xbf16>, vector<8x8xbf16>, vector<64x8xf32> -> vector<64x8xf32>
    %100 = arith.addf %94, %99 : vector<64x8xf32>
    %c1_107 = arith.constant 1 : index
    %c2_108 = arith.constant 2 : index
    %c0_109 = arith.constant 0 : index
    %101 = vector.load %arg9[%c1_107, %c2_108, %c0_109] : memref<10x10x8xbf16, #tpu.memory_space<vmem>>, vector<8x8x8xbf16>
    %102 = vector.shape_cast %101 : vector<8x8x8xbf16> to vector<64x8xbf16>
    %c5_110 = arith.constant 5 : index
    %c0_111 = arith.constant 0 : index
    %c0_112 = arith.constant 0 : index
    %103 = vector.load %arg4[%c5_110, %c0_111, %c0_112] : memref<9x8x8xbf16, #tpu.memory_space<vmem>>, vector<1x8x8xbf16>
    %104 = vector.shape_cast %103 : vector<1x8x8xbf16> to vector<8x8xbf16>
    %cst_113 = arith.constant dense<0.000000e+00> : vector<64x8xf32>
    %105 = tpu.matmul %102, %104, %cst_113 {dimension_numbers = #tpu.dot_dimension_numbers<[1], [0], [0], [1], [0, 0, 1, 1], [], []>} : vector<64x8xbf16>, vector<8x8xbf16>, vector<64x8xf32> -> vector<64x8xf32>
    %106 = arith.addf %100, %105 : vector<64x8xf32>
    %c2_114 = arith.constant 2 : index
    %c0_115 = arith.constant 0 : index
    %c0_116 = arith.constant 0 : index
    %107 = vector.load %arg9[%c2_114, %c0_115, %c0_116] : memref<10x10x8xbf16, #tpu.memory_space<vmem>>, vector<8x8x8xbf16>
    %108 = vector.shape_cast %107 : vector<8x8x8xbf16> to vector<64x8xbf16>
    %c6_117 = arith.constant 6 : index
    %c0_118 = arith.constant 0 : index
    %c0_119 = arith.constant 0 : index
    %109 = vector.load %arg4[%c6_117, %c0_118, %c0_119] : memref<9x8x8xbf16, #tpu.memory_space<vmem>>, vector<1x8x8xbf16>
    %110 = vector.shape_cast %109 : vector<1x8x8xbf16> to vector<8x8xbf16>
    %cst_120 = arith.constant dense<0.000000e+00> : vector<64x8xf32>
    %111 = tpu.matmul %108, %110, %cst_120 {dimension_numbers = #tpu.dot_dimension_numbers<[1], [0], [0], [1], [0, 0, 1, 1], [], []>} : vector<64x8xbf16>, vector<8x8xbf16>, vector<64x8xf32> -> vector<64x8xf32>
    %112 = arith.addf %106, %111 : vector<64x8xf32>
    %c2_121 = arith.constant 2 : index
    %c1_122 = arith.constant 1 : index
    %c0_123 = arith.constant 0 : index
    %113 = vector.load %arg9[%c2_121, %c1_122, %c0_123] : memref<10x10x8xbf16, #tpu.memory_space<vmem>>, vector<8x8x8xbf16>
    %114 = vector.shape_cast %113 : vector<8x8x8xbf16> to vector<64x8xbf16>
    %c7_124 = arith.constant 7 : index
    %c0_125 = arith.constant 0 : index
    %c0_126 = arith.constant 0 : index
    %115 = vector.load %arg4[%c7_124, %c0_125, %c0_126] : memref<9x8x8xbf16, #tpu.memory_space<vmem>>, vector<1x8x8xbf16>
    %116 = vector.shape_cast %115 : vector<1x8x8xbf16> to vector<8x8xbf16>
    %cst_127 = arith.constant dense<0.000000e+00> : vector<64x8xf32>
    %117 = tpu.matmul %114, %116, %cst_127 {dimension_numbers = #tpu.dot_dimension_numbers<[1], [0], [0], [1], [0, 0, 1, 1], [], []>} : vector<64x8xbf16>, vector<8x8xbf16>, vector<64x8xf32> -> vector<64x8xf32>
    %118 = arith.addf %112, %117 : vector<64x8xf32>
    %c2_128 = arith.constant 2 : index
    %c2_129 = arith.constant 2 : index
    %c0_130 = arith.constant 0 : index
    %119 = vector.load %arg9[%c2_128, %c2_129, %c0_130] : memref<10x10x8xbf16, #tpu.memory_space<vmem>>, vector<8x8x8xbf16>
    %120 = vector.shape_cast %119 : vector<8x8x8xbf16> to vector<64x8xbf16>
    %c8_131 = arith.constant 8 : index
    %c0_132 = arith.constant 0 : index
    %c0_133 = arith.constant 0 : index
    %121 = vector.load %arg4[%c8_131, %c0_132, %c0_133] : memref<9x8x8xbf16, #tpu.memory_space<vmem>>, vector<1x8x8xbf16>
    %122 = vector.shape_cast %121 : vector<1x8x8xbf16> to vector<8x8xbf16>
    %cst_134 = arith.constant dense<0.000000e+00> : vector<64x8xf32>
    %123 = tpu.matmul %120, %122, %cst_134 {dimension_numbers = #tpu.dot_dimension_numbers<[1], [0], [0], [1], [0, 0, 1, 1], [], []>} : vector<64x8xbf16>, vector<8x8xbf16>, vector<64x8xf32> -> vector<64x8xf32>
    %124 = arith.addf %118, %123 : vector<64x8xf32>
    %c0_135 = arith.constant 0 : index
    %c0_136 = arith.constant 0 : index
    %125 = vector.load %arg5[%c0_135, %c0_136] : memref<1x8xf32, #tpu.memory_space<vmem>>, vector<1x8xf32>
    %126 = vector.broadcast %125 : vector<1x8xf32> to vector<64x8xf32>
    %127 = arith.addf %124, %126 : vector<64x8xf32>
    %c3_137 = arith.constant 3 : index
    %c0_138 = arith.constant 0 : index
    %c0_139 = arith.constant 0 : index
    %c0_140 = arith.constant 0 : index
    %128 = vector.load %arg1[%c3_137, %c0_138, %c0_139, %c0_140] : memref<4x9x9x4xbf16, #tpu.memory_space<vmem>>, vector<1x8x8x4xbf16>
    %129 = vector.shape_cast %128 : vector<1x8x8x4xbf16> to vector<8x8x4xbf16>
    %130 = vector.shape_cast %129 : vector<8x8x4xbf16> to vector<64x4xbf16>
    %c0_141 = arith.constant 0 : index
    %c0_142 = arith.constant 0 : index
    %131 = vector.load %arg6[%c0_141, %c0_142] : memref<4x8xbf16, #tpu.memory_space<vmem>>, vector<4x8xbf16>
    %cst_143 = arith.constant dense<0.000000e+00> : vector<64x8xf32>
    %132 = tpu.matmul %130, %131, %cst_143 {dimension_numbers = #tpu.dot_dimension_numbers<[1], [0], [0], [1], [0, 0, 1, 1], [], []>} : vector<64x4xbf16>, vector<4x8xbf16>, vector<64x8xf32> -> vector<64x8xf32>
    %c0_144 = arith.constant 0 : index
    %c0_145 = arith.constant 0 : index
    %133 = vector.load %arg7[%c0_144, %c0_145] : memref<1x8xf32, #tpu.memory_space<vmem>>, vector<1x8xf32>
    %134 = vector.broadcast %133 : vector<1x8xf32> to vector<64x8xf32>
    %135 = arith.addf %132, %134 : vector<64x8xf32>
    %136 = arith.addf %127, %135 : vector<64x8xf32>
    %cst_146 = arith.constant 0.000000e+00 : f32
    %137 = vector.broadcast %cst_146 : f32 to vector<64x8xf32>
    %138 = arith.maximumf %136, %137 : vector<64x8xf32>
    %139 = vector.shape_cast %138 : vector<64x8xf32> to vector<8x8x8xf32>
    %c0_147 = arith.constant 0 : index
    %c0_148 = arith.constant 0 : index
    %c0_149 = arith.constant 0 : index
    %c0_150 = arith.constant 0 : index
    %140 = vector.load %arg8[%c0_147, %c0_148, %c0_149, %c0_150] : memref<1x8x8x8xf32, #tpu.memory_space<vmem>>, vector<1x8x8x8xf32>
    %141 = vector.shape_cast %140 : vector<1x8x8x8xf32> to vector<8x8x8xf32>
    %142 = vector.shape_cast %139 : vector<8x8x8xf32> to vector<1x8x8x8xf32>
    tpu.vector_store %arg8[%c0_147, %c0_148, %c0_149, %c0_150], %142 {strides = array<i32>} : memref<1x8x8x8xf32, #tpu.memory_space<vmem>>, vector<1x8x8x8xf32>,
    return
  }
  func.func @transform_0(%arg0: i32) -> (i32, i32, i32, i32) {
    %c0_i32 = arith.constant 0 : i32
    %c0_i32_0 = arith.constant 0 : i32
    %c0_i32_1 = arith.constant 0 : i32
    %c0_i32_2 = arith.constant 0 : i32
    return %arg0, %c0_i32, %c0_i32_0, %c0_i32_1 : i32, i32, i32, i32
  }
  func.func @transform_1(%arg0: i32) -> (i32, i32, i32) {
    %c0_i32 = arith.constant 0 : i32
    %c0_i32_0 = arith.constant 0 : i32
    %c0_i32_1 = arith.constant 0 : i32
    %c0_i32_2 = arith.constant 0 : i32
    return %c0_i32, %c0_i32_0, %c0_i32_1 : i32, i32, i32
  }
  func.func @transform_2(%arg0: i32) -> (i32, i32) {
    %c0_i32 = arith.constant 0 : i32
    %c0_i32_0 = arith.constant 0 : i32
    %c0_i32_1 = arith.constant 0 : i32
    return %c0_i32, %c0_i32_0 : i32, i32
  }
  func.func @transform_3(%arg0: i32) -> (i32, i32, i32) {
    %c0_i32 = arith.constant 0 : i32
    %c0_i32_0 = arith.constant 0 : i32
    %c0_i32_1 = arith.constant 0 : i32
    %c0_i32_2 = arith.constant 0 : i32
    return %c0_i32, %c0_i32_0, %c0_i32_1 : i32, i32, i32
  }
  func.func @transform_4(%arg0: i32) -> (i32, i32) {
    %c0_i32 = arith.constant 0 : i32
    %c0_i32_0 = arith.constant 0 : i32
    %c0_i32_1 = arith.constant 0 : i32
    return %c0_i32, %c0_i32_0 : i32, i32
  }
  func.func @transform_5(%arg0: i32) -> (i32, i32) {
    %c0_i32 = arith.constant 0 : i32
    %c0_i32_0 = arith.constant 0 : i32
    %c0_i32_1 = arith.constant 0 : i32
    return %c0_i32, %c0_i32_0 : i32, i32
  }
  func.func @transform_6(%arg0: i32) -> (i32, i32) {
    %c0_i32 = arith.constant 0 : i32
    %c0_i32_0 = arith.constant 0 : i32
    %c0_i32_1 = arith.constant 0 : i32
    return %c0_i32, %c0_i32_0 : i32, i32
  }
  func.func @transform_7(%arg0: i32) -> (i32, i32, i32, i32) {
    %c0_i32 = arith.constant 0 : i32
    %c0_i32_0 = arith.constant 0 : i32
    %c0_i32_1 = arith.constant 0 : i32
    %c0_i32_2 = arith.constant 0 : i32
    return %arg0, %c0_i32, %c0_i32_0, %c0_i32_1 : i32, i32, i32, i32
  }
}

</mosaic_0001>

<llo_original>
// kernel: basic_block_forward.1
$region0: #{basic_block_forward.1}
  #allocation0 [shape = 'u32[]', space=smem, size = 0x4, offset = 0x4, fixed_abs, tag = 'smem constant byte address 0x4 - core index']
  #allocation1 [shape = 'u32[72,128]{1,0:T(1,128)}', space=vmem, size = 0x9000, scoped, tag = 'internal scratch']
  #allocation2 [shape = 'bf16[10,10,8]{2,1,0:T(8,128)(2,1)}', space=vmem, size = 0xa000, scoped, tag = 'scratch operand']
  %s0 = inlined_call_operand.vmem [shape: bf16[8,9,9,4], index: 0, kind: input, shape index: {}]
  %s1 = inlined_call_operand.vmem [shape: bf16[9,4,8], index: 1, kind: input, shape index: {}]
  %s2 = inlined_call_operand.vmem [shape: f32[1,8], index: 2, kind: input, shape index: {}]
  %s3 = inlined_call_operand.vmem [shape: bf16[9,8,8], index: 3, kind: input, shape index: {}]
  %s4 = inlined_call_operand.vmem [shape: f32[1,8], index: 4, kind: input, shape index: {}]
  %s5 = inlined_call_operand.vmem [shape: bf16[4,8], index: 5, kind: input, shape index: {}]
  %s6 = inlined_call_operand.vmem [shape: f32[1,8], index: 6, kind: input, shape index: {}]
  %s7 = inlined_call_operand.vmem [shape: f32[2,8,8,8], index: 7, kind: output, shape index: {}]
  %s8 = sld [smem:[#allocation0]]
  $region61: #{basic_block_forward.1} parent=0
    _
  %s10 = ssub.s32 1, %s8
  %s11 = scalar_select 0, %s10, %s8
  loop: start=0, step=1, limit=4
  $region2: #{basic_block_forward.1} parent=0 // loop_pre_header
    _
  $region3: #{basic_block_forward.1} parent=0 // loop_header
    %s13 = sphi 0, %s17
    %p14 = scmp.ge.s32.totalorder %s13, 4
    %s23 = sphi 0, %s25
    %s26 = sphi 0, %s23
    %s27 = sphi 0, %s26
    %s43 = sphi 0, %s27
    %s47 = sphi 0, %s47
    %s49 = sphi 0, %s47
    %s50 = sphi 0, %s49
    %s64 = sphi 0, %s50
    %s68 = sphi 0, %s68
    %s70 = sphi 0, %s68
    %s71 = sphi 0, %s70
    %s85 = sphi 0, %s71
    %s89 = sphi 0, %s89
    %s91 = sphi 0, %s89
    %s92 = sphi 0, %s91
    %s106 = sphi 0, %s92
    %s110 = sphi 0, %s110
    %s112 = sphi 0, %s110
    %s113 = sphi 0, %s112
    %s127 = sphi 0, %s113
    %s131 = sphi 0, %s131
    %s133 = sphi 0, %s131
    %s134 = sphi 0, %s133
    %s148 = sphi 0, %s134
    %s152 = sphi 0, %s152
    %s154 = sphi 0, %s152
    %s155 = sphi 0, %s154
    %s169 = sphi 0, %s155
    %s175 = sphi 0, %s177
    %s178 = sphi 0, %s175
    %s179 = sphi 0, %s178
    %s195 = sphi 0, %s179
  $region4: #{basic_block_forward.1} parent=0 // loop_header_branch
    %16 = sbr.rel (%p14) target = $region8
  $region5: #{basic_block_forward.1} parent=0 // loop_body
    %s18 = ssub.s32 %s13, 1
    %s19 = ssub.s32 %s13, 2
    %s20 = sadd.s32 %s13, 1
    %s21 = ssub.s32 %s13, %s20
    %p22 = scmp.eq.s32.totalorder %s21, 0
    %s24 = sadd.s32 %s23, 1
    %s25 = scalar_select %p22, %s23, %s24
    %p28 = pneg %p22
    %p29 = scmp.eq.s32.totalorder %s13, 1
    %p30 = por %p28, %p29
    %p31 = scmp.ne.s32.totalorder %s23, %s26
    %p32 = scmp.eq.s32.totalorder %s13, 0
    %p33 = por %p31, %p32
    %p34 = scmp.ne.s32.totalorder %s23, %s26
    %p35 = scmp.eq.s32.totalorder %s18, 1
    %p36 = por %p34, %p35
    %p37 = scmp.ne.s32.totalorder %s26, %s27
    %p38 = scmp.eq.s32.totalorder %s18, 0
    %p39 = por %p37, %p38
    %p40 = scmp.ne.s32.totalorder %s26, %s27
    %p41 = scmp.eq.s32.totalorder %s19, 1
    %p42 = por %p40, %p41
    %p44 = scmp.ne.s32.totalorder %s27, %s43
    %p45 = scmp.eq.s32.totalorder %s19, 0
    %p46 = por %p44, %p45
    %s48 = sadd.s32 %s47, 1
    %p51 = scmp.eq.s32.totalorder %s13, 1
    %p52 = scmp.ne.s32.totalorder %s47, %s49
    %p53 = scmp.eq.s32.totalorder %s13, 0
    %p54 = por %p52, %p53
    %p55 = scmp.ne.s32.totalorder %s47, %s49
    %p56 = scmp.eq.s32.totalorder %s18, 1
    %p57 = por %p55, %p56
    %p58 = scmp.ne.s32.totalorder %s49, %s50
    %p59 = scmp.eq.s32.totalorder %s18, 0
    %p60 = por %p58, %p59
    %p61 = scmp.ne.s32.totalorder %s49, %s50
    %p62 = scmp.eq.s32.totalorder %s19, 1
    %p63 = por %p61, %p62
    %p65 = scmp.ne.s32.totalorder %s50, %s64
    %p66 = scmp.eq.s32.totalorder %s19, 0
    %p67 = por %p65, %p66
    %s69 = sadd.s32 %s68, 1
    %p72 = scmp.eq.s32.totalorder %s13, 1
    %p73 = scmp.ne.s32.totalorder %s68, %s70
    %p74 = scmp.eq.s32.totalorder %s13, 0
    %p75 = por %p73, %p74
    %p76 = scmp.ne.s32.totalorder %s68, %s70
    %p77 = scmp.eq.s32.totalorder %s18, 1
    %p78 = por %p76, %p77
    %p79 = scmp.ne.s32.totalorder %s70, %s71
    %p80 = scmp.eq.s32.totalorder %s18, 0
    %p81 = por %p79, %p80
    %p82 = scmp.ne.s32.totalorder %s70, %s71
    %p83 = scmp.eq.s32.totalorder %s19, 1
    %p84 = por %p82, %p83
    %p86 = scmp.ne.s32.totalorder %s71, %s85
    %p87 = scmp.eq.s32.totalorder %s19, 0
    %p88 = por %p86, %p87
    %s90 = sadd.s32 %s89, 1
    %p93 = scmp.eq.s32.totalorder %s13, 1
    %p94 = scmp.ne.s32.totalorder %s89, %s91
    %p95 = scmp.eq.s32.totalorder %s13, 0
    %p96 = por %p94, %p95
    %p97 = scmp.ne.s32.totalorder %s89, %s91
    %p98 = scmp.eq.s32.totalorder %s18, 1
    %p99 = por %p97, %p98
    %p100 = scmp.ne.s32.totalorder %s91, %s92
    %p101 = scmp.eq.s32.totalorder %s18, 0
    %p102 = por %p100, %p101
    %p103 = scmp.ne.s32.totalorder %s91, %s92
    %p104 = scmp.eq.s32.totalorder %s19, 1
    %p105 = por %p103, %p104
    %p107 = scmp.ne.s32.totalorder %s92, %s106
    %p108 = scmp.eq.s32.totalorder %s19, 0
    %p109 = por %p107, %p108
    %s111 = sadd.s32 %s110, 1
    %p114 = scmp.eq.s32.totalorder %s13, 1
    %p115 = scmp.ne.s32.totalorder %s110, %s112
    %p116 = scmp.eq.s32.totalorder %s13, 0
    %p117 = por %p115, %p116
    %p118 = scmp.ne.s32.totalorder %s110, %s112
    %p119 = scmp.eq.s32.totalorder %s18, 1
    %p120 = por %p118, %p119
    %p121 = scmp.ne.s32.totalorder %s112, %s113
    %p122 = scmp.eq.s32.totalorder %s18, 0
    %p123 = por %p121, %p122
    %p124 = scmp.ne.s32.totalorder %s112, %s113
    %p125 = scmp.eq.s32.totalorder %s19, 1
    %p126 = por %p124, %p125
    %p128 = scmp.ne.s32.totalorder %s113, %s127
    %p129 = scmp.eq.s32.totalorder %s19, 0
    %p130 = por %p128, %p129
    %s132 = sadd.s32 %s131, 1
    %p135 = scmp.eq.s32.totalorder %s13, 1
    %p136 = scmp.ne.s32.totalorder %s131, %s133
    %p137 = scmp.eq.s32.totalorder %s13, 0
    %p138 = por %p136, %p137
    %p139 = scmp.ne.s32.totalorder %s131, %s133
    %p140 = scmp.eq.s32.totalorder %s18, 1
    %p141 = por %p139, %p140
    %p142 = scmp.ne.s32.totalorder %s133, %s134
    %p143 = scmp.eq.s32.totalorder %s18, 0
    %p144 = por %p142, %p143
    %p145 = scmp.ne.s32.totalorder %s133, %s134
    %p146 = scmp.eq.s32.totalorder %s19, 1
    %p147 = por %p145, %p146
    %p149 = scmp.ne.s32.totalorder %s134, %s148
    %p150 = scmp.eq.s32.totalorder %s19, 0
    %p151 = por %p149, %p150
    %s153 = sadd.s32 %s152, 1
    %p156 = scmp.eq.s32.totalorder %s13, 1
    %p157 = scmp.ne.s32.totalorder %s152, %s154
    %p158 = scmp.eq.s32.totalorder %s13, 0
    %p159 = por %p157, %p158
    %p160 = scmp.ne.s32.totalorder %s152, %s154
    %p161 = scmp.eq.s32.totalorder %s18, 1
    %p162 = por %p160, %p161
    %p163 = scmp.ne.s32.totalorder %s154, %s155
    %p164 = scmp.eq.s32.totalorder %s18, 0
    %p165 = por %p163, %p164
    %p166 = scmp.ne.s32.totalorder %s154, %s155
    %p167 = scmp.eq.s32.totalorder %s19, 1
    %p168 = por %p166, %p167
    %p170 = scmp.ne.s32.totalorder %s155, %s169
    %p171 = scmp.eq.s32.totalorder %s19, 0
    %p172 = por %p170, %p171
    %s173 = ssub.s32 %s13, %s20
    %p174 = scmp.eq.s32.totalorder %s173, 0
    %s176 = sadd.s32 %s175, 1
    %s177 = scalar_select %p174, %s175, %s176
    %p180 = pneg %p174
    %p181 = scmp.eq.s32.totalorder %s13, 1
    %p182 = por %p180, %p181
    %p183 = scmp.ne.s32.totalorder %s175, %s178
    %p184 = scmp.eq.s32.totalorder %s13, 0
    %p185 = por %p183, %p184
    %p186 = scmp.ne.s32.totalorder %s175, %s178
    %p187 = scmp.eq.s32.totalorder %s18, 1
    %p188 = por %p186, %p187
    %p189 = scmp.ne.s32.totalorder %s178, %s179
    %p190 = scmp.eq.s32.totalorder %s18, 0
    %p191 = por %p189, %p190
    %p192 = scmp.ne.s32.totalorder %s178, %s179
    %p193 = scmp.eq.s32.totalorder %s19, 1
    %p194 = por %p192, %p193
    %p196 = scmp.ne.s32.totalorder %s179, %s195
    %p197 = scmp.eq.s32.totalorder %s19, 0
    %p198 = por %p196, %p197
    %p199 = scmp.le.s32.totalorder 1, %s13
    %p200 = scmp.lt.s32.totalorder %s13, 3
    %p201 = pnand %p199, %p200
    %p202 = pneg %p201
    // Predicated region
    $region9: #{basic_block_forward.1} parent=5 // pred_check
      _
    $region10: #{basic_block_forward.1} parent=5 // pred_check_branch
      %204 = sbr.rel (%p201) target = $region12
    $region11: #{basic_block_forward.1} parent=5 // pred_region
      %s205 = ssub.s32 %s13, 1
      // Predicated region
      $region13: #{basic_block_forward.1} parent=11 // pred_check
        %p206 = pneg %p60
      $region14: #{basic_block_forward.1} parent=11 // pred_check_branch
        %208 = sbr.rel (%p206) target = $region16
      $region15: #{basic_block_forward.1} parent=11 // pred_region
        _
      $region16: #{basic_block_forward.1} parent=11 // pred_fallthru
        _
      // Predicated region
      $region17: #{basic_block_forward.1} parent=11 // pred_check
        %p209 = pneg %p81
      $region18: #{basic_block_forward.1} parent=11 // pred_check_branch
        %211 = sbr.rel (%p209) target = $region20
      $region19: #{basic_block_forward.1} parent=11 // pred_region
        _
      $region20: #{basic_block_forward.1} parent=11 // pred_fallthru
        _
      // Predicated region
      $region21: #{basic_block_forward.1} parent=11 // pred_check
        %p212 = pneg %p102
      $region22: #{basic_block_forward.1} parent=11 // pred_check_branch
        %214 = sbr.rel (%p212) target = $region24
      $region23: #{basic_block_forward.1} parent=11 // pred_region
        _
      $region24: #{basic_block_forward.1} parent=11 // pred_fallthru
        _
      // Predicated region
      $region25: #{basic_block_forward.1} parent=11 // pred_check
        %p215 = pneg %p123
      $region26: #{basic_block_forward.1} parent=11 // pred_check_branch
        %217 = sbr.rel (%p215) target = $region28
      $region27: #{basic_block_forward.1} parent=11 // pred_region
        _
      $region28: #{basic_block_forward.1} parent=11 // pred_fallthru
        _
      // Predicated region
      $region29: #{basic_block_forward.1} parent=11 // pred_check
        %p218 = pneg %p144
      $region30: #{basic_block_forward.1} parent=11 // pred_check_branch
        %220 = sbr.rel (%p218) target = $region32
      $region31: #{basic_block_forward.1} parent=11 // pred_region
        _
      $region32: #{basic_block_forward.1} parent=11 // pred_fallthru
        _
      // Predicated region
      $region33: #{basic_block_forward.1} parent=11 // pred_check
        %p221 = pneg %p165
      $region34: #{basic_block_forward.1} parent=11 // pred_check_branch
        %223 = sbr.rel (%p221) target = $region36
      $region35: #{basic_block_forward.1} parent=11 // pred_region
        _
      $region36: #{basic_block_forward.1} parent=11 // pred_fallthru
        _
    $region12: #{basic_block_forward.1} parent=5 // pred_fallthru
      _
    %p224 = scmp.lt.s32.totalorder %s13, 2
    // Predicated region
    $region37: #{basic_block_forward.1} parent=5 // pred_check
      %p225 = pneg %p224
    $region38: #{basic_block_forward.1} parent=5 // pred_check_branch
      %227 = sbr.rel (%p225) target = $region40
    $region39: #{basic_block_forward.1} parent=5 // pred_region
      // Predicated region
      $region41: #{basic_block_forward.1} parent=39 // pred_check
        %p228 = pneg %p33
      $region42: #{basic_block_forward.1} parent=39 // pred_check_branch
        %230 = sbr.rel (%p228) target = $region44
      $region43: #{basic_block_forward.1} parent=39 // pred_region
        %s231 = smul.u32 4, %s13
        %p232 = scmp.lt.s32.totalorder %s231, 7
        %s233 = scalar_select %p232, %s231, 7
        %s234 = smul.addr %s233, 18
        %s235 = smul.addr %s234, 4
        %s236 = scalar_lea.vmem %s0, %s235
        %s237 = smul.u32 4, %s13
      $region44: #{basic_block_forward.1} parent=39 // pred_fallthru
        _
    $region40: #{basic_block_forward.1} parent=5 // pred_fallthru
      _
    %p238 = scmp.le.s32.totalorder 1, %s13
    %p239 = scmp.lt.s32.totalorder %s13, 3
    %p240 = pnand %p238, %p239
    %p241 = pneg %p240
    // Predicated region
    $region45: #{basic_block_forward.1} parent=5 // pred_check
      _
    $region46: #{basic_block_forward.1} parent=5 // pred_check_branch
      %243 = sbr.rel (%p240) target = $region48
    $region47: #{basic_block_forward.1} parent=5 // pred_region
      %s244 = ssub.s32 %s13, 1
      %s245 = smul.u32 4, %s18
      %p246 = scmp.lt.s32.totalorder %s245, 7
      %s247 = scalar_select %p246, %s245, 7
      %s248 = smul.addr %s247, 18
      %s249 = smul.addr %s248, 4
      %s250 = scalar_lea.vmem %s0, %s249
      %p251 = pneg %p39
      %p252 = pneg %p36
      %p253 = pneg %p60
      %p254 = pneg %p57
      %p255 = pneg %p81
      %p256 = pneg %p78
      %p257 = pneg %p102
      %p258 = pneg %p99
      %p259 = pneg %p123
      %p260 = pneg %p120
      %p261 = pneg %p144
      %p262 = pneg %p141
      %p263 = pneg %p165
      %p264 = pneg %p162
      %p265 = pneg %p191
      %p266 = pneg %p188
      %p267 = scmp.lt.s32.totalorder %s18, 1
      %s268 = scalar_select %p267, %s18, 1
      %s269 = smul.addr %s268, 8
      %s270 = smul.addr %s269, 8
      %s271 = scalar_lea.vmem %s7, %s270
      %s272 = smul.u32 4, %s18
      %p273 = scmp.lt.s32.totalorder %s272, 7
      %s274 = scalar_select %p273, %s272, 7
      %s275 = smul.addr %s274, 18
      %s276 = smul.addr %s275, 4
      %s277 = scalar_lea.vmem %s0, %s276
      %s278 = smul.u32 4, %s18
      %p279 = scmp.lt.s32.totalorder %s18, 1
      %s280 = scalar_select %p279, %s18, 1
      %s281 = smul.addr %s280, 8
      %s282 = smul.addr %s281, 8
      %s283 = scalar_lea.vmem %s7, %s282
      %v285 = vld [vmem:[%s277] sm:$0xf]
      %v286 = vld [vmem:[%s277 + $0x8] sm:$0xf]
      %v287 = vld [vmem:[%s277 + $0x10] sm:$0xf]
      %v288 = vld [vmem:[%s277 + $0x18] sm:$0xf]
      %v289 = vld [vmem:[%s277 + $0x20] sm:$0xf]
      %v290 = vld [vmem:[%s277 + $0x28] sm:$0xf]
      %v291 = vld [vmem:[%s277 + $0x30] sm:$0xf]
      %v292 = vld [vmem:[%s277 + $0x38] sm:$0xf]
      %v293 = vld [vmem:[%s1] sm:$0x3]
      %s294 = scalar_lea.vmem %s277, 72
      %v295 = vld [vmem:[%s294] sm:$0xf]
      %v296 = vld [vmem:[%s294 + $0x8] sm:$0xf]
      %v297 = vld [vmem:[%s294 + $0x10] sm:$0xf]
      %v298 = vld [vmem:[%s294 + $0x18] sm:$0xf]
      %v299 = vld [vmem:[%s294 + $0x20] sm:$0xf]
      %v300 = vld [vmem:[%s294 + $0x28] sm:$0xf]
      %v301 = vld [vmem:[%s294 + $0x30] sm:$0xf]
      %v302 = vld [vmem:[%s294 + $0x38] sm:$0xf]
      %s303 = scalar_lea.vmem %s1, 2
      %v304 = vld [vmem:[%s303] sm:$0x3]
      %v313 = vunpack.c.l.b16 %v295
      %v314 = vunpack.c.l.b16 %v296
      %v315 = vunpack.c.l.b16 %v297
      %v316 = vunpack.c.l.b16 %v298
      %v317 = vunpack.c.l.b16 %v299
      %v318 = vunpack.c.l.b16 %v300
      %v319 = vunpack.c.l.b16 %v301
      %v320 = vunpack.c.l.b16 %v302
      %v321 = vpack.c.b16 %v314, %v313
      %v322 = vpack.c.b16 %v316, %v315
      %v323 = vpack.c.b16 %v318, %v317
      %v324 = vpack.c.b16 %v320, %v319
      %vm325 = vcmask 31744
      %v327 = vsel %vm325, %v321, 0
      %v330 = vsel %vm325, %v322, 0
      %v333 = vsel %vm325, %v323, 0
      %v336 = vsel %vm325, %v324, 0
      %vm338 = vcmask 1041408
      %v340 = vsel %vm338, %v304, 0
      %342 = vmatpush.bf16.msra.mxu0 0
      %343 = vmatpush.bf16.msra.mxu0 0
      %344 = vmatpush.bf16.msra.mxu0 0
      %345 = vmatpush.bf16.msra.mxu0 0
      %346 = vmatpush.bf16.msra.mxu0 0
      %347 = vmatpush.bf16.msra.mxu0 0
      %348 = vmatpush.bf16.msra.mxu0 0
      %349 = vmatpush.bf16.msra.mxu0 %v340
      %350 = vmatmul.bf16.gmra.mxu0 %v327
      %v351 = vpop.f32.mrf.mxu0
      %v352 = vadd.f32 0.0, %v351
      %v353 = vpop.f32.mrf.mxu0
      %v354 = vadd.f32 0.0, %v353
      %355 = vmatmul.bf16.gmra.mxu0 %v330
      %v356 = vpop.f32.mrf.mxu0
      %v357 = vadd.f32 0.0, %v356
      %v358 = vpop.f32.mrf.mxu0
      %v359 = vadd.f32 0.0, %v358
      %360 = vmatmul.bf16.gmra.mxu0 %v333
      %v361 = vpop.f32.mrf.mxu0
      %v362 = vadd.f32 0.0, %v361
      %v363 = vpop.f32.mrf.mxu0
      %v364 = vadd.f32 0.0, %v363
      %365 = vmatmul.bf16.gmra.mxu0 %v336
      %v366 = vpop.f32.mrf.mxu0
      %v367 = vadd.f32 0.0, %v366
      %v368 = vpop.f32.mrf.mxu0
      %v369 = vadd.f32 0.0, %v368
      %370 = vdwg.mxu0
      %v379 = vunpack.c.l.b16 %v285
      %v380 = vunpack.c.l.b16 %v286
      %v381 = vunpack.c.l.b16 %v287
      %v382 = vunpack.c.l.b16 %v288
      %v383 = vunpack.c.l.b16 %v289
      %v384 = vunpack.c.l.b16 %v290
      %v385 = vunpack.c.l.b16 %v291
      %v386 = vunpack.c.l.b16 %v292
      %v387 = vpack.c.b16 %v380, %v379
      %v388 = vpack.c.b16 %v382, %v381
      %v389 = vpack.c.b16 %v384, %v383
      %v390 = vpack.c.b16 %v386, %v385
      %v392 = vsel %vm325, %v387, 0
      %v395 = vsel %vm325, %v388, 0
      %v398 = vsel %vm325, %v389, 0
      %v401 = vsel %vm325, %v390, 0
      %v404 = vsel %vm338, %v293, 0
      %406 = vmatpush.bf16.msra.mxu0 0
      %407 = vmatpush.bf16.msra.mxu0 0
      %408 = vmatpush.bf16.msra.mxu0 0
      %409 = vmatpush.bf16.msra.mxu0 0
      %410 = vmatpush.bf16.msra.mxu0 0
      %411 = vmatpush.bf16.msra.mxu0 0
      %412 = vmatpush.bf16.msra.mxu0 0
      %413 = vmatpush.bf16.msra.mxu0 %v404
      %414 = vmatmul.bf16.gmra.mxu0 %v392
      %v415 = vpop.f32.mrf.mxu0
      %v416 = vadd.f32 %v352, %v415
      %v417 = vpop.f32.mrf.mxu0
      %v418 = vadd.f32 %v354, %v417
      %419 = vmatmul.bf16.gmra.mxu0 %v395
      %v420 = vpop.f32.mrf.mxu0
      %v421 = vadd.f32 %v357, %v420
      %v422 = vpop.f32.mrf.mxu0
      %v423 = vadd.f32 %v359, %v422
      %424 = vmatmul.bf16.gmra.mxu0 %v398
      %v425 = vpop.f32.mrf.mxu0
      %v426 = vadd.f32 %v362, %v425
      %v427 = vpop.f32.mrf.mxu0
      %v428 = vadd.f32 %v364, %v427
      %429 = vmatmul.bf16.gmra.mxu0 %v401
      %v430 = vpop.f32.mrf.mxu0
      %v431 = vadd.f32 %v367, %v430
      %v432 = vpop.f32.mrf.mxu0
      %v433 = vadd.f32 %v369, %v432
      %434 = vdwg.mxu0
      %v435 = vld [vmem:[%s277] sm:$0xf]
      %v436 = vld [vmem:[%s277 + $0x4] sm:$0x1]
      %v437 = vld [vmem:[%s277 + $0x8] sm:$0xf]
      %v438 = vld [vmem:[%s277 + $0xc] sm:$0x1]
      %v439 = vld [vmem:[%s277 + $0x10] sm:$0xf]
      %v440 = vld [vmem:[%s277 + $0x14] sm:$0x1]
      %v441 = vld [vmem:[%s277 + $0x18] sm:$0xf]
      %v442 = vld [vmem:[%s277 + $0x1c] sm:$0x1]
      %v443 = vld [vmem:[%s277 + $0x20] sm:$0xf]
      %v444 = vld [vmem:[%s277 + $0x24] sm:$0x1]
      %v445 = vld [vmem:[%s277 + $0x28] sm:$0xf]
      %v446 = vld [vmem:[%s277 + $0x2c] sm:$0x1]
      %v447 = vld [vmem:[%s277 + $0x30] sm:$0xf]
      %v448 = vld [vmem:[%s277 + $0x34] sm:$0x1]
      %v449 = vld [vmem:[%s277 + $0x38] sm:$0xf]
      %v450 = vld [vmem:[%s277 + $0x3c] sm:$0x1]
      %vm451 = vsmask.f32 3328
      %vm452 = vsmask.f32 7440
      %vm453 = vmor %vm451, %vm452
      %v455 = vshrl.u32 %v435, 16
      %v457 = vrot.slane %v455, 4
      %v458 = vshll.u32 %v435, 16
      %v460 = vrot.slane %v458, 5
      %v461 = vor.u32 %v457, %v460
      %v462 = vrot.slane %v461, 4
      %v464 = vshll.u32 %v436, 16
      %v466 = vrot.slane %v464, 5
      %v467 = vsel %vm453, %v462, %v466
      %v469 = vshrl.u32 %v437, 16
      %v471 = vrot.slane %v469, 4
      %v472 = vshll.u32 %v437, 16
      %v474 = vrot.slane %v472, 5
      %v475 = vor.u32 %v471, %v474
      %v476 = vrot.slane %v475, 4
      %v478 = vshll.u32 %v438, 16
      %v480 = vrot.slane %v478, 5
      %v481 = vsel %vm453, %v476, %v480
      %v483 = vshrl.u32 %v439, 16
      %v485 = vrot.slane %v483, 4
      %v486 = vshll.u32 %v439, 16
      %v488 = vrot.slane %v486, 5
      %v489 = vor.u32 %v485, %v488
      %v490 = vrot.slane %v489, 4
      %v492 = vshll.u32 %v440, 16
      %v494 = vrot.slane %v492, 5
      %v495 = vsel %vm453, %v490, %v494
      %v497 = vshrl.u32 %v441, 16
      %v499 = vrot.slane %v497, 4
      %v500 = vshll.u32 %v441, 16
      %v502 = vrot.slane %v500, 5
      %v503 = vor.u32 %v499, %v502
      %v504 = vrot.slane %v503, 4
      %v506 = vshll.u32 %v442, 16
      %v508 = vrot.slane %v506, 5
      %v509 = vsel %vm453, %v504, %v508
      %v511 = vshrl.u32 %v443, 16
      %v513 = vrot.slane %v511, 4
      %v514 = vshll.u32 %v443, 16
      %v516 = vrot.slane %v514, 5
      %v517 = vor.u32 %v513, %v516
      %v518 = vrot.slane %v517, 4
      %v520 = vshll.u32 %v444, 16
      %v522 = vrot.slane %v520, 5
      %v523 = vsel %vm453, %v518, %v522
      %v525 = vshrl.u32 %v445, 16
      %v527 = vrot.slane %v525, 4
      %v528 = vshll.u32 %v445, 16
      %v530 = vrot.slane %v528, 5
      %v531 = vor.u32 %v527, %v530
      %v532 = vrot.slane %v531, 4
      %v534 = vshll.u32 %v446, 16
      %v536 = vrot.slane %v534, 5
      %v537 = vsel %vm453, %v532, %v536
      %v539 = vshrl.u32 %v447, 16
      %v541 = vrot.slane %v539, 4
      %v542 = vshll.u32 %v447, 16
      %v544 = vrot.slane %v542, 5
      %v545 = vor.u32 %v541, %v544
      %v546 = vrot.slane %v545, 4
      %v548 = vshll.u32 %v448, 16
      %v550 = vrot.slane %v548, 5
      %v551 = vsel %vm453, %v546, %v550
      %v553 = vshrl.u32 %v449, 16
      %v555 = vrot.slane %v553, 4
      %v556 = vshll.u32 %v449, 16
      %v558 = vrot.slane %v556, 5
      %v559 = vor.u32 %v555, %v558
      %v560 = vrot.slane %v559, 4
      %v562 = vshll.u32 %v450, 16
      %v564 = vrot.slane %v562, 5
      %v565 = vsel %vm453, %v560, %v564
      %s566 = scalar_lea.vmem %s1, 4
      %v567 = vld [vmem:[%s566] sm:$0x3]
      %v568 = vunpack.c.l.b16 %v467
      %v569 = vunpack.c.l.b16 %v481
      %v570 = vunpack.c.l.b16 %v495
      %v571 = vunpack.c.l.b16 %v509
      %v572 = vunpack.c.l.b16 %v523
      %v573 = vunpack.c.l.b16 %v537
      %v574 = vunpack.c.l.b16 %v551
      %v575 = vunpack.c.l.b16 %v565
      %v576 = vpack.c.b16 %v569, %v568
      %v577 = vpack.c.b16 %v571, %v570
      %v578 = vpack.c.b16 %v573, %v572
      %v579 = vpack.c.b16 %v575, %v574
      %v581 = vsel %vm325, %v576, 0
      %v584 = vsel %vm325, %v577, 0
      %v587 = vsel %vm325, %v578, 0
      %v590 = vsel %vm325, %v579, 0
      %v593 = vsel %vm338, %v567, 0
      %595 = vmatpush.bf16.msra.mxu0 0
      %596 = vmatpush.bf16.msra.mxu0 0
      %597 = vmatpush.bf16.msra.mxu0 0
      %598 = vmatpush.bf16.msra.mxu0 0
      %599 = vmatpush.bf16.msra.mxu0 0
      %600 = vmatpush.bf16.msra.mxu0 0
      %601 = vmatpush.bf16.msra.mxu0 0
      %602 = vmatpush.bf16.msra.mxu0 %v593
      %603 = vmatmul.bf16.gmra.mxu0 %v581
      %v604 = vpop.f32.mrf.mxu0
      %v605 = vadd.f32 0.0, %v604
      %v606 = vpop.f32.mrf.mxu0
      %v607 = vadd.f32 0.0, %v606
      %608 = vmatmul.bf16.gmra.mxu0 %v584
      %v609 = vpop.f32.mrf.mxu0
      %v610 = vadd.f32 0.0, %v609
      %v611 = vpop.f32.mrf.mxu0
      %v612 = vadd.f32 0.0, %v611
      %613 = vmatmul.bf16.gmra.mxu0 %v587
      %v614 = vpop.f32.mrf.mxu0
      %v615 = vadd.f32 0.0, %v614
      %v616 = vpop.f32.mrf.mxu0
      %v617 = vadd.f32 0.0, %v616
      %618 = vmatmul.bf16.gmra.mxu0 %v590
      %v619 = vpop.f32.mrf.mxu0
      %v620 = vadd.f32 0.0, %v619
      %v621 = vpop.f32.mrf.mxu0
      %v622 = vadd.f32 0.0, %v621
      %623 = vdwg.mxu0
      %v624 = vadd.f32 %v416, %v605
      %v625 = vadd.f32 %v418, %v607
      %v626 = vadd.f32 %v421, %v610
      %v627 = vadd.f32 %v423, %v612
      %v628 = vadd.f32 %v426, %v615
      %v629 = vadd.f32 %v428, %v617
      %v630 = vadd.f32 %v431, %v620
      %v631 = vadd.f32 %v433, %v622
      %s632 = scalar_lea.vmem %s277, 144
      %v633 = vld [vmem:[%s632] sm:$0xf]
      %v634 = vld [vmem:[%s632 + $0x8] sm:$0xf]
      %v635 = vld [vmem:[%s632 + $0x10] sm:$0xf]
      %v636 = vld [vmem:[%s632 + $0x18] sm:$0xf]
      %v637 = vld [vmem:[%s632 + $0x20] sm:$0xf]
      %v638 = vld [vmem:[%s632 + $0x28] sm:$0xf]
      %v639 = vld [vmem:[%s632 + $0x30] sm:$0xf]
      %v640 = vld [vmem:[%s632 + $0x38] sm:$0xf]
      %s641 = scalar_lea.vmem %s1, 6
      %v642 = vld [vmem:[%s641] sm:$0x3]
      %v651 = vunpack.c.l.b16 %v633
      %v652 = vunpack.c.l.b16 %v634
      %v653 = vunpack.c.l.b16 %v635
      %v654 = vunpack.c.l.b16 %v636
      %v655 = vunpack.c.l.b16 %v637
      %v656 = vunpack.c.l.b16 %v638
      %v657 = vunpack.c.l.b16 %v639
      %v658 = vunpack.c.l.b16 %v640
      %v659 = vpack.c.b16 %v652, %v651
      %v660 = vpack.c.b16 %v654, %v653
      %v661 = vpack.c.b16 %v656, %v655
      %v662 = vpack.c.b16 %v658, %v657
      %v664 = vsel %vm325, %v659, 0
      %v667 = vsel %vm325, %v660, 0
      %v670 = vsel %vm325, %v661, 0
      %v673 = vsel %vm325, %v662, 0
      %v676 = vsel %vm338, %v642, 0
      %678 = vmatpush.bf16.msra.mxu0 0
      %679 = vmatpush.bf16.msra.mxu0 0
      %680 = vmatpush.bf16.msra.mxu0 0
      %681 = vmatpush.bf16.msra.mxu0 0
      %682 = vmatpush.bf16.msra.mxu0 0
      %683 = vmatpush.bf16.msra.mxu0 0
      %684 = vmatpush.bf16.msra.mxu0 0
      %685 = vmatpush.bf16.msra.mxu0 %v676
      %686 = vmatmul.bf16.gmra.mxu0 %v664
      %v687 = vpop.f32.mrf.mxu0
      %v688 = vadd.f32 0.0, %v687
      %v689 = vpop.f32.mrf.mxu0
      %v690 = vadd.f32 0.0, %v689
      %691 = vmatmul.bf16.gmra.mxu0 %v667
      %v692 = vpop.f32.mrf.mxu0
      %v693 = vadd.f32 0.0, %v692
      %v694 = vpop.f32.mrf.mxu0
      %v695 = vadd.f32 0.0, %v694
      %696 = vmatmul.bf16.gmra.mxu0 %v670
      %v697 = vpop.f32.mrf.mxu0
      %v698 = vadd.f32 0.0, %v697
      %v699 = vpop.f32.mrf.mxu0
      %v700 = vadd.f32 0.0, %v699
      %701 = vmatmul.bf16.gmra.mxu0 %v673
      %v702 = vpop.f32.mrf.mxu0
      %v703 = vadd.f32 0.0, %v702
      %v704 = vpop.f32.mrf.mxu0
      %v705 = vadd.f32 0.0, %v704
      %706 = vdwg.mxu0
      %v707 = vadd.f32 %v624, %v688
      %v708 = vadd.f32 %v625, %v690
      %v709 = vadd.f32 %v626, %v693
      %v710 = vadd.f32 %v627, %v695
      %v711 = vadd.f32 %v628, %v698
      %v712 = vadd.f32 %v629, %v700
      %v713 = vadd.f32 %v630, %v703
      %v714 = vadd.f32 %v631, %v705
      %s715 = scalar_lea.vmem %s277, 216
      %v716 = vld [vmem:[%s715] sm:$0xf]
      %v717 = vld [vmem:[%s715 + $0x8] sm:$0xf]
      %v718 = vld [vmem:[%s715 + $0x10] sm:$0xf]
      %v719 = vld [vmem:[%s715 + $0x18] sm:$0xf]
      %v720 = vld [vmem:[%s715 + $0x20] sm:$0xf]
      %v721 = vld [vmem:[%s715 + $0x28] sm:$0xf]
      %v722 = vld [vmem:[%s715 + $0x30] sm:$0xf]
      %v723 = vld [vmem:[%s715 + $0x38] sm:$0xf]
      %s724 = scalar_lea.vmem %s1, 8
      %v725 = vld [vmem:[%s724] sm:$0x3]
      %v734 = vunpack.c.l.b16 %v716
      %v735 = vunpack.c.l.b16 %v717
      %v736 = vunpack.c.l.b16 %v718
      %v737 = vunpack.c.l.b16 %v719
      %v738 = vunpack.c.l.b16 %v720
      %v739 = vunpack.c.l.b16 %v721
      %v740 = vunpack.c.l.b16 %v722
      %v741 = vunpack.c.l.b16 %v723
      %v742 = vpack.c.b16 %v735, %v734
      %v743 = vpack.c.b16 %v737, %v736
      %v744 = vpack.c.b16 %v739, %v738
      %v745 = vpack.c.b16 %v741, %v740
      %v747 = vsel %vm325, %v742, 0
      %v750 = vsel %vm325, %v743, 0
      %v753 = vsel %vm325, %v744, 0
      %v756 = vsel %vm325, %v745, 0
      %v759 = vsel %vm338, %v725, 0
      %761 = vmatpush.bf16.msra.mxu0 0
      %762 = vmatpush.bf16.msra.mxu0 0
      %763 = vmatpush.bf16.msra.mxu0 0
      %764 = vmatpush.bf16.msra.mxu0 0
      %765 = vmatpush.bf16.msra.mxu0 0
      %766 = vmatpush.bf16.msra.mxu0 0
      %767 = vmatpush.bf16.msra.mxu0 0
      %768 = vmatpush.bf16.msra.mxu0 %v759
      %769 = vmatmul.bf16.gmra.mxu0 %v747
      %v770 = vpop.f32.mrf.mxu0
      %v771 = vadd.f32 0.0, %v770
      %v772 = vpop.f32.mrf.mxu0
      %v773 = vadd.f32 0.0, %v772
      %774 = vmatmul.bf16.gmra.mxu0 %v750
      %v775 = vpop.f32.mrf.mxu0
      %v776 = vadd.f32 0.0, %v775
      %v777 = vpop.f32.mrf.mxu0
      %v778 = vadd.f32 0.0, %v777
      %779 = vmatmul.bf16.gmra.mxu0 %v753
      %v780 = vpop.f32.mrf.mxu0
      %v781 = vadd.f32 0.0, %v780
      %v782 = vpop.f32.mrf.mxu0
      %v783 = vadd.f32 0.0, %v782
      %784 = vmatmul.bf16.gmra.mxu0 %v756
      %v785 = vpop.f32.mrf.mxu0
      %v786 = vadd.f32 0.0, %v785
      %v787 = vpop.f32.mrf.mxu0
      %v788 = vadd.f32 0.0, %v787
      %789 = vdwg.mxu0
      %v790 = vadd.f32 %v707, %v771
      %v791 = vadd.f32 %v708, %v773
      %v792 = vadd.f32 %v709, %v776
      %v793 = vadd.f32 %v710, %v778
      %v794 = vadd.f32 %v711, %v781
      %v795 = vadd.f32 %v712, %v783
      %v796 = vadd.f32 %v713, %v786
      %v797 = vadd.f32 %v714, %v788
      %v798 = vld [vmem:[%s632] sm:$0xf]
      %v799 = vld [vmem:[%s632 + $0x4] sm:$0x1]
      %v800 = vld [vmem:[%s632 + $0x8] sm:$0xf]
      %v801 = vld [vmem:[%s632 + $0xc] sm:$0x1]
      %v802 = vld [vmem:[%s632 + $0x10] sm:$0xf]
      %v803 = vld [vmem:[%s632 + $0x14] sm:$0x1]
      %v804 = vld [vmem:[%s632 + $0x18] sm:$0xf]
      %v805 = vld [vmem:[%s632 + $0x1c] sm:$0x1]
      %v806 = vld [vmem:[%s632 + $0x20] sm:$0xf]
      %v807 = vld [vmem:[%s632 + $0x24] sm:$0x1]
      %v808 = vld [vmem:[%s632 + $0x28] sm:$0xf]
      %v809 = vld [vmem:[%s632 + $0x2c] sm:$0x1]
      %v810 = vld [vmem:[%s632 + $0x30] sm:$0xf]
      %v811 = vld [vmem:[%s632 + $0x34] sm:$0x1]
      %v812 = vld [vmem:[%s632 + $0x38] sm:$0xf]
      %v813 = vld [vmem:[%s632 + $0x3c] sm:$0x1]
      %v815 = vshrl.u32 %v798, 16
      %v817 = vrot.slane %v815, 4
      %v818 = vshll.u32 %v798, 16
      %v820 = vrot.slane %v818, 5
      %v821 = vor.u32 %v817, %v820
      %v822 = vrot.slane %v821, 4
      %v824 = vshll.u32 %v799, 16
      %v826 = vrot.slane %v824, 5
      %v827 = vsel %vm453, %v822, %v826
      %v829 = vshrl.u32 %v800, 16
      %v831 = vrot.slane %v829, 4
      %v832 = vshll.u32 %v800, 16
      %v834 = vrot.slane %v832, 5
      %v835 = vor.u32 %v831, %v834
      %v836 = vrot.slane %v835, 4
      %v838 = vshll.u32 %v801, 16
      %v840 = vrot.slane %v838, 5
      %v841 = vsel %vm453, %v836, %v840
      %v843 = vshrl.u32 %v802, 16
      %v845 = vrot.slane %v843, 4
      %v846 = vshll.u32 %v802, 16
      %v848 = vrot.slane %v846, 5
      %v849 = vor.u32 %v845, %v848
      %v850 = vrot.slane %v849, 4
      %v852 = vshll.u32 %v803, 16
      %v854 = vrot.slane %v852, 5
      %v855 = vsel %vm453, %v850, %v854
      %v857 = vshrl.u32 %v804, 16
      %v859 = vrot.slane %v857, 4
      %v860 = vshll.u32 %v804, 16
      %v862 = vrot.slane %v860, 5
      %v863 = vor.u32 %v859, %v862
      %v864 = vrot.slane %v863, 4
      %v866 = vshll.u32 %v805, 16
      %v868 = vrot.slane %v866, 5
      %v869 = vsel %vm453, %v864, %v868
      %v871 = vshrl.u32 %v806, 16
      %v873 = vrot.slane %v871, 4
      %v874 = vshll.u32 %v806, 16
      %v876 = vrot.slane %v874, 5
      %v877 = vor.u32 %v873, %v876
      %v878 = vrot.slane %v877, 4
      %v880 = vshll.u32 %v807, 16
      %v882 = vrot.slane %v880, 5
      %v883 = vsel %vm453, %v878, %v882
      %v885 = vshrl.u32 %v808, 16
      %v887 = vrot.slane %v885, 4
      %v888 = vshll.u32 %v808, 16
      %v890 = vrot.slane %v888, 5
      %v891 = vor.u32 %v887, %v890
      %v892 = vrot.slane %v891, 4
      %v894 = vshll.u32 %v809, 16
      %v896 = vrot.slane %v894, 5
      %v897 = vsel %vm453, %v892, %v896
      %v899 = vshrl.u32 %v810, 16
      %v901 = vrot.slane %v899, 4
      %v902 = vshll.u32 %v810, 16
      %v904 = vrot.slane %v902, 5
      %v905 = vor.u32 %v901, %v904
      %v906 = vrot.slane %v905, 4
      %v908 = vshll.u32 %v811, 16
      %v910 = vrot.slane %v908, 5
      %v911 = vsel %vm453, %v906, %v910
      %v913 = vshrl.u32 %v812, 16
      %v915 = vrot.slane %v913, 4
      %v916 = vshll.u32 %v812, 16
      %v918 = vrot.slane %v916, 5
      %v919 = vor.u32 %v915, %v918
      %v920 = vrot.slane %v919, 4
      %v922 = vshll.u32 %v813, 16
      %v924 = vrot.slane %v922, 5
      %v925 = vsel %vm453, %v920, %v924
      %s926 = scalar_lea.vmem %s1, 10
      %v927 = vld [vmem:[%s926] sm:$0x3]
      %v928 = vunpack.c.l.b16 %v827
      %v929 = vunpack.c.l.b16 %v841
      %v930 = vunpack.c.l.b16 %v855
      %v931 = vunpack.c.l.b16 %v869
      %v932 = vunpack.c.l.b16 %v883
      %v933 = vunpack.c.l.b16 %v897
      %v934 = vunpack.c.l.b16 %v911
      %v935 = vunpack.c.l.b16 %v925
      %v936 = vpack.c.b16 %v929, %v928
      %v937 = vpack.c.b16 %v931, %v930
      %v938 = vpack.c.b16 %v933, %v932
      %v939 = vpack.c.b16 %v935, %v934
      %v941 = vsel %vm325, %v936, 0
      %v944 = vsel %vm325, %v937, 0
      %v947 = vsel %vm325, %v938, 0
      %v950 = vsel %vm325, %v939, 0
      %v953 = vsel %vm338, %v927, 0
      %955 = vmatpush.bf16.msra.mxu0 0
      %956 = vmatpush.bf16.msra.mxu0 0
      %957 = vmatpush.bf16.msra.mxu0 0
      %958 = vmatpush.bf16.msra.mxu0 0
      %959 = vmatpush.bf16.msra.mxu0 0
      %960 = vmatpush.bf16.msra.mxu0 0
      %961 = vmatpush.bf16.msra.mxu0 0
      %962 = vmatpush.bf16.msra.mxu0 %v953
      %963 = vmatmul.bf16.gmra.mxu0 %v941
      %v964 = vpop.f32.mrf.mxu0
      %v965 = vadd.f32 0.0, %v964
      %v966 = vpop.f32.mrf.mxu0
      %v967 = vadd.f32 0.0, %v966
      %968 = vmatmul.bf16.gmra.mxu0 %v944
      %v969 = vpop.f32.mrf.mxu0
      %v970 = vadd.f32 0.0, %v969
      %v971 = vpop.f32.mrf.mxu0
      %v972 = vadd.f32 0.0, %v971
      %973 = vmatmul.bf16.gmra.mxu0 %v947
      %v974 = vpop.f32.mrf.mxu0
      %v975 = vadd.f32 0.0, %v974
      %v976 = vpop.f32.mrf.mxu0
      %v977 = vadd.f32 0.0, %v976
      %978 = vmatmul.bf16.gmra.mxu0 %v950
      %v979 = vpop.f32.mrf.mxu0
      %v980 = vadd.f32 0.0, %v979
      %v981 = vpop.f32.mrf.mxu0
      %v982 = vadd.f32 0.0, %v981
      %983 = vdwg.mxu0
      %v984 = vadd.f32 %v790, %v965
      %v985 = vadd.f32 %v791, %v967
      %v986 = vadd.f32 %v792, %v970
      %v987 = vadd.f32 %v793, %v972
      %v988 = vadd.f32 %v794, %v975
      %v989 = vadd.f32 %v795, %v977
      %v990 = vadd.f32 %v796, %v980
      %v991 = vadd.f32 %v797, %v982
      %s992 = scalar_lea.vmem %s277, 8
      %v993 = vld [vmem:[%s992] sm:$0xf]
      %v994 = vld [vmem:[%s992 + $0x8] sm:$0xf]
      %v995 = vld [vmem:[%s992 + $0x10] sm:$0xf]
      %v996 = vld [vmem:[%s992 + $0x18] sm:$0xf]
      %v997 = vld [vmem:[%s992 + $0x20] sm:$0xf]
      %v998 = vld [vmem:[%s992 + $0x28] sm:$0xf]
      %v999 = vld [vmem:[%s992 + $0x30] sm:$0xf]
      %v1000 = vld [vmem:[%s992 + $0x38] sm:$0xf]
      %s1001 = scalar_lea.vmem %s1, 12
      %v1002 = vld [vmem:[%s1001] sm:$0x3]
      %v1011 = vunpack.c.l.b16 %v993
      %v1012 = vunpack.c.l.b16 %v994
      %v1013 = vunpack.c.l.b16 %v995
      %v1014 = vunpack.c.l.b16 %v996
      %v1015 = vunpack.c.l.b16 %v997
      %v1016 = vunpack.c.l.b16 %v998
      %v1017 = vunpack.c.l.b16 %v999
      %v1018 = vunpack.c.l.b16 %v1000
      %v1019 = vpack.c.b16 %v1012, %v1011
      %v1020 = vpack.c.b16 %v1014, %v1013
      %v1021 = vpack.c.b16 %v1016, %v1015
      %v1022 = vpack.c.b16 %v1018, %v1017
      %v1024 = vsel %vm325, %v1019, 0
      %v1027 = vsel %vm325, %v1020, 0
      %v1030 = vsel %vm325, %v1021, 0
      %v1033 = vsel %vm325, %v1022, 0
      %v1036 = vsel %vm338, %v1002, 0
      %1038 = vmatpush.bf16.msra.mxu0 0
      %1039 = vmatpush.bf16.msra.mxu0 0
      %1040 = vmatpush.bf16.msra.mxu0 0
      %1041 = vmatpush.bf16.msra.mxu0 0
      %1042 = vmatpush.bf16.msra.mxu0 0
      %1043 = vmatpush.bf16.msra.mxu0 0
      %1044 = vmatpush.bf16.msra.mxu0 0
      %1045 = vmatpush.bf16.msra.mxu0 %v1036
      %1046 = vmatmul.bf16.gmra.mxu0 %v1024
      %v1047 = vpop.f32.mrf.mxu0
      %v1048 = vadd.f32 0.0, %v1047
      %v1049 = vpop.f32.mrf.mxu0
      %v1050 = vadd.f32 0.0, %v1049
      %1051 = vmatmul.bf16.gmra.mxu0 %v1027
      %v1052 = vpop.f32.mrf.mxu0
      %v1053 = vadd.f32 0.0, %v1052
      %v1054 = vpop.f32.mrf.mxu0
      %v1055 = vadd.f32 0.0, %v1054
      %1056 = vmatmul.bf16.gmra.mxu0 %v1030
      %v1057 = vpop.f32.mrf.mxu0
      %v1058 = vadd.f32 0.0, %v1057
      %v1059 = vpop.f32.mrf.mxu0
      %v1060 = vadd.f32 0.0, %v1059
      %1061 = vmatmul.bf16.gmra.mxu0 %v1033
      %v1062 = vpop.f32.mrf.mxu0
      %v1063 = vadd.f32 0.0, %v1062
      %v1064 = vpop.f32.mrf.mxu0
      %v1065 = vadd.f32 0.0, %v1064
      %1066 = vdwg.mxu0
      %v1067 = vadd.f32 %v984, %v1048
      %v1068 = vadd.f32 %v985, %v1050
      %v1069 = vadd.f32 %v986, %v1053
      %v1070 = vadd.f32 %v987, %v1055
      %v1071 = vadd.f32 %v988, %v1058
      %v1072 = vadd.f32 %v989, %v1060
      %v1073 = vadd.f32 %v990, %v1063
      %v1074 = vadd.f32 %v991, %v1065
      %s1075 = scalar_lea.vmem %s277, 80
      %v1076 = vld [vmem:[%s1075] sm:$0xf]
      %v1077 = vld [vmem:[%s1075 + $0x8] sm:$0xf]
      %v1078 = vld [vmem:[%s1075 + $0x10] sm:$0xf]
      %v1079 = vld [vmem:[%s1075 + $0x18] sm:$0xf]
      %v1080 = vld [vmem:[%s1075 + $0x20] sm:$0xf]
      %v1081 = vld [vmem:[%s1075 + $0x28] sm:$0xf]
      %v1082 = vld [vmem:[%s1075 + $0x30] sm:$0xf]
      %v1083 = vld [vmem:[%s1075 + $0x38] sm:$0xf]
      %s1084 = scalar_lea.vmem %s1, 14
      %v1085 = vld [vmem:[%s1084] sm:$0x3]
      %v1094 = vunpack.c.l.b16 %v1076
      %v1095 = vunpack.c.l.b16 %v1077
      %v1096 = vunpack.c.l.b16 %v1078
      %v1097 = vunpack.c.l.b16 %v1079
      %v1098 = vunpack.c.l.b16 %v1080
      %v1099 = vunpack.c.l.b16 %v1081
      %v1100 = vunpack.c.l.b16 %v1082
      %v1101 = vunpack.c.l.b16 %v1083
      %v1102 = vpack.c.b16 %v1095, %v1094
      %v1103 = vpack.c.b16 %v1097, %v1096
      %v1104 = vpack.c.b16 %v1099, %v1098
      %v1105 = vpack.c.b16 %v1101, %v1100
      %v1107 = vsel %vm325, %v1102, 0
      %v1110 = vsel %vm325, %v1103, 0
      %v1113 = vsel %vm325, %v1104, 0
      %v1116 = vsel %vm325, %v1105, 0
      %v1119 = vsel %vm338, %v1085, 0
      %1121 = vmatpush.bf16.msra.mxu0 0
      %1122 = vmatpush.bf16.msra.mxu0 0
      %1123 = vmatpush.bf16.msra.mxu0 0
      %1124 = vmatpush.bf16.msra.mxu0 0
      %1125 = vmatpush.bf16.msra.mxu0 0
      %1126 = vmatpush.bf16.msra.mxu0 0
      %1127 = vmatpush.bf16.msra.mxu0 0
      %1128 = vmatpush.bf16.msra.mxu0 %v1119
      %1129 = vmatmul.bf16.gmra.mxu0 %v1107
      %v1130 = vpop.f32.mrf.mxu0
      %v1131 = vadd.f32 0.0, %v1130
      %v1132 = vpop.f32.mrf.mxu0
      %v1133 = vadd.f32 0.0, %v1132
      %1134 = vmatmul.bf16.gmra.mxu0 %v1110
      %v1135 = vpop.f32.mrf.mxu0
      %v1136 = vadd.f32 0.0, %v1135
      %v1137 = vpop.f32.mrf.mxu0
      %v1138 = vadd.f32 0.0, %v1137
      %1139 = vmatmul.bf16.gmra.mxu0 %v1113
      %v1140 = vpop.f32.mrf.mxu0
      %v1141 = vadd.f32 0.0, %v1140
      %v1142 = vpop.f32.mrf.mxu0
      %v1143 = vadd.f32 0.0, %v1142
      %1144 = vmatmul.bf16.gmra.mxu0 %v1116
      %v1145 = vpop.f32.mrf.mxu0
      %v1146 = vadd.f32 0.0, %v1145
      %v1147 = vpop.f32.mrf.mxu0
      %v1148 = vadd.f32 0.0, %v1147
      %1149 = vdwg.mxu0
      %v1150 = vadd.f32 %v1067, %v1131
      %v1151 = vadd.f32 %v1068, %v1133
      %v1152 = vadd.f32 %v1069, %v1136
      %v1153 = vadd.f32 %v1070, %v1138
      %v1154 = vadd.f32 %v1071, %v1141
      %v1155 = vadd.f32 %v1072, %v1143
      %v1156 = vadd.f32 %v1073, %v1146
      %v1157 = vadd.f32 %v1074, %v1148
      %v1158 = vld [vmem:[%s992] sm:$0xf]
      %v1159 = vld [vmem:[%s992 + $0x4] sm:$0x1]
      %v1160 = vld [vmem:[%s992 + $0x8] sm:$0xf]
      %v1161 = vld [vmem:[%s992 + $0xc] sm:$0x1]
      %v1162 = vld [vmem:[%s992 + $0x10] sm:$0xf]
      %v1163 = vld [vmem:[%s992 + $0x14] sm:$0x1]
      %v1164 = vld [vmem:[%s992 + $0x18] sm:$0xf]
      %v1165 = vld [vmem:[%s992 + $0x1c] sm:$0x1]
      %v1166 = vld [vmem:[%s992 + $0x20] sm:$0xf]
      %v1167 = vld [vmem:[%s992 + $0x24] sm:$0x1]
      %v1168 = vld [vmem:[%s992 + $0x28] sm:$0xf]
      %v1169 = vld [vmem:[%s992 + $0x2c] sm:$0x1]
      %v1170 = vld [vmem:[%s992 + $0x30] sm:$0xf]
      %v1171 = vld [vmem:[%s992 + $0x34] sm:$0x1]
      %v1172 = vld [vmem:[%s992 + $0x38] sm:$0xf]
      %v1173 = vld [vmem:[%s992 + $0x3c] sm:$0x1]
      %v1175 = vshrl.u32 %v1158, 16
      %v1177 = vrot.slane %v1175, 4
      %v1178 = vshll.u32 %v1158, 16
      %v1180 = vrot.slane %v1178, 5
      %v1181 = vor.u32 %v1177, %v1180
      %v1182 = vrot.slane %v1181, 4
      %v1184 = vshll.u32 %v1159, 16
      %v1186 = vrot.slane %v1184, 5
      %v1187 = vsel %vm453, %v1182, %v1186
      %v1189 = vshrl.u32 %v1160, 16
      %v1191 = vrot.slane %v1189, 4
      %v1192 = vshll.u32 %v1160, 16
      %v1194 = vrot.slane %v1192, 5
      %v1195 = vor.u32 %v1191, %v1194
      %v1196 = vrot.slane %v1195, 4
      %v1198 = vshll.u32 %v1161, 16
      %v1200 = vrot.slane %v1198, 5
      %v1201 = vsel %vm453, %v1196, %v1200
      %v1203 = vshrl.u32 %v1162, 16
      %v1205 = vrot.slane %v1203, 4
      %v1206 = vshll.u32 %v1162, 16
      %v1208 = vrot.slane %v1206, 5
      %v1209 = vor.u32 %v1205, %v1208
      %v1210 = vrot.slane %v1209, 4
      %v1212 = vshll.u32 %v1163, 16
      %v1214 = vrot.slane %v1212, 5
      %v1215 = vsel %vm453, %v1210, %v1214
      %v1217 = vshrl.u32 %v1164, 16
      %v1219 = vrot.slane %v1217, 4
      %v1220 = vshll.u32 %v1164, 16
      %v1222 = vrot.slane %v1220, 5
      %v1223 = vor.u32 %v1219, %v1222
      %v1224 = vrot.slane %v1223, 4
      %v1226 = vshll.u32 %v1165, 16
      %v1228 = vrot.slane %v1226, 5
      %v1229 = vsel %vm453, %v1224, %v1228
      %v1231 = vshrl.u32 %v1166, 16
      %v1233 = vrot.slane %v1231, 4
      %v1234 = vshll.u32 %v1166, 16
      %v1236 = vrot.slane %v1234, 5
      %v1237 = vor.u32 %v1233, %v1236
      %v1238 = vrot.slane %v1237, 4
      %v1240 = vshll.u32 %v1167, 16
      %v1242 = vrot.slane %v1240, 5
      %v1243 = vsel %vm453, %v1238, %v1242
      %v1245 = vshrl.u32 %v1168, 16
      %v1247 = vrot.slane %v1245, 4
      %v1248 = vshll.u32 %v1168, 16
      %v1250 = vrot.slane %v1248, 5
      %v1251 = vor.u32 %v1247, %v1250
      %v1252 = vrot.slane %v1251, 4
      %v1254 = vshll.u32 %v1169, 16
      %v1256 = vrot.slane %v1254, 5
      %v1257 = vsel %vm453, %v1252, %v1256
      %v1259 = vshrl.u32 %v1170, 16
      %v1261 = vrot.slane %v1259, 4
      %v1262 = vshll.u32 %v1170, 16
      %v1264 = vrot.slane %v1262, 5
      %v1265 = vor.u32 %v1261, %v1264
      %v1266 = vrot.slane %v1265, 4
      %v1268 = vshll.u32 %v1171, 16
      %v1270 = vrot.slane %v1268, 5
      %v1271 = vsel %vm453, %v1266, %v1270
      %v1273 = vshrl.u32 %v1172, 16
      %v1275 = vrot.slane %v1273, 4
      %v1276 = vshll.u32 %v1172, 16
      %v1278 = vrot.slane %v1276, 5
      %v1279 = vor.u32 %v1275, %v1278
      %v1280 = vrot.slane %v1279, 4
      %v1282 = vshll.u32 %v1173, 16
      %v1284 = vrot.slane %v1282, 5
      %v1285 = vsel %vm453, %v1280, %v1284
      %s1286 = scalar_lea.vmem %s1, 16
      %v1287 = vld [vmem:[%s1286] sm:$0x3]
      %v1288 = vunpack.c.l.b16 %v1187
      %v1289 = vunpack.c.l.b16 %v1201
      %v1290 = vunpack.c.l.b16 %v1215
      %v1291 = vunpack.c.l.b16 %v1229
      %v1292 = vunpack.c.l.b16 %v1243
      %v1293 = vunpack.c.l.b16 %v1257
      %v1294 = vunpack.c.l.b16 %v1271
      %v1295 = vunpack.c.l.b16 %v1285
      %v1296 = vpack.c.b16 %v1289, %v1288
      %v1297 = vpack.c.b16 %v1291, %v1290
      %v1298 = vpack.c.b16 %v1293, %v1292
      %v1299 = vpack.c.b16 %v1295, %v1294
      %v1301 = vsel %vm325, %v1296, 0
      %v1304 = vsel %vm325, %v1297, 0
      %v1307 = vsel %vm325, %v1298, 0
      %v1310 = vsel %vm325, %v1299, 0
      %v1313 = vsel %vm338, %v1287, 0
      %1315 = vmatpush.bf16.msra.mxu0 0
      %1316 = vmatpush.bf16.msra.mxu0 0
      %1317 = vmatpush.bf16.msra.mxu0 0
      %1318 = vmatpush.bf16.msra.mxu0 0
      %1319 = vmatpush.bf16.msra.mxu0 0
      %1320 = vmatpush.bf16.msra.mxu0 0
      %1321 = vmatpush.bf16.msra.mxu0 0
      %1322 = vmatpush.bf16.msra.mxu0 %v1313
      %1323 = vmatmul.bf16.gmra.mxu0 %v1301
      %v1324 = vpop.f32.mrf.mxu0
      %v1325 = vadd.f32 0.0, %v1324
      %v1326 = vpop.f32.mrf.mxu0
      %v1327 = vadd.f32 0.0, %v1326
      %1328 = vmatmul.bf16.gmra.mxu0 %v1304
      %v1329 = vpop.f32.mrf.mxu0
      %v1330 = vadd.f32 0.0, %v1329
      %v1331 = vpop.f32.mrf.mxu0
      %v1332 = vadd.f32 0.0, %v1331
      %1333 = vmatmul.bf16.gmra.mxu0 %v1307
      %v1334 = vpop.f32.mrf.mxu0
      %v1335 = vadd.f32 0.0, %v1334
      %v1336 = vpop.f32.mrf.mxu0
      %v1337 = vadd.f32 0.0, %v1336
      %1338 = vmatmul.bf16.gmra.mxu0 %v1310
      %v1339 = vpop.f32.mrf.mxu0
      %v1340 = vadd.f32 0.0, %v1339
      %v1341 = vpop.f32.mrf.mxu0
      %v1342 = vadd.f32 0.0, %v1341
      %1343 = vdwg.mxu0
      %v1344 = vadd.f32 %v1150, %v1325
      %v1345 = vadd.f32 %v1151, %v1327
      %v1346 = vadd.f32 %v1152, %v1330
      %v1347 = vadd.f32 %v1153, %v1332
      %v1348 = vadd.f32 %v1154, %v1335
      %v1349 = vadd.f32 %v1155, %v1337
      %v1350 = vadd.f32 %v1156, %v1340
      %v1351 = vadd.f32 %v1157, %v1342
      %v1352 = vld [vmem:[%s2] sm:$0x1]
      %v1354 = vperm.slane %v1352, 0
      %v1356 = vadd.f32 %v1344, %v1354
      %v1357 = vadd.f32 %v1345, %v1354
      %v1358 = vadd.f32 %v1346, %v1354
      %v1359 = vadd.f32 %v1347, %v1354
      %v1360 = vadd.f32 %v1348, %v1354
      %v1361 = vadd.f32 %v1349, %v1354
      %v1362 = vadd.f32 %v1350, %v1354
      %v1363 = vadd.f32 %v1351, %v1354
      %v1364 = vmax.f32 %v1356, 0.0
      %v1365 = vmax.f32 %v1357, 0.0
      %v1366 = vmax.f32 %v1358, 0.0
      %v1367 = vmax.f32 %v1359, 0.0
      %v1368 = vmax.f32 %v1360, 0.0
      %v1369 = vmax.f32 %v1361, 0.0
      %v1370 = vmax.f32 %v1362, 0.0
      %v1371 = vmax.f32 %v1363, 0.0
      %vm1372 = vcmask 60416
      %1373 = vst.msk [vmem:[#allocation2] sm:$0xf] %vm1372, 0
      %vm1374 = vcmask 57344
      %1375 = vst.msk [vmem:[#allocation2 + $0x4] sm:$0x1] %vm1374, 0
      %1376 = vst.msk [vmem:[#allocation2 + $0x8] sm:$0xf] %vm1372, 0
      %1377 = vst.msk [vmem:[#allocation2 + $0xc] sm:$0x1] %vm1374, 0
      %1378 = vst.msk [vmem:[#allocation2 + $0x10] sm:$0xf] %vm1372, 0
      %1379 = vst.msk [vmem:[#allocation2 + $0x14] sm:$0x1] %vm1374, 0
      %1380 = vst.msk [vmem:[#allocation2 + $0x18] sm:$0xf] %vm1372, 0
      %1381 = vst.msk [vmem:[#allocation2 + $0x1c] sm:$0x1] %vm1374, 0
      %1382 = vst.msk [vmem:[#allocation2 + $0x20] sm:$0xf] %vm1372, 0
      %1383 = vst.msk [vmem:[#allocation2 + $0x24] sm:$0x1] %vm1374, 0
      %1384 = vst.msk [vmem:[#allocation2 + $0x28] sm:$0xf] %vm1372, 0
      %1385 = vst.msk [vmem:[#allocation2 + $0x2c] sm:$0x1] %vm1374, 0
      %1386 = vst.msk [vmem:[#allocation2 + $0x30] sm:$0xf] %vm1372, 0
      %1387 = vst.msk [vmem:[#allocation2 + $0x34] sm:$0x1] %vm1374, 0
      %1388 = vst.msk [vmem:[#allocation2 + $0x38] sm:$0xf] %vm1372, 0
      %1389 = vst.msk [vmem:[#allocation2 + $0x3c] sm:$0x1] %vm1374, 0
      %1390 = vst.msk [vmem:[#allocation2 + $0x40] sm:$0xf] %vm1372, 0
      %1391 = vst.msk [vmem:[#allocation2 + $0x44] sm:$0x1] %vm1374, 0
      %1392 = vst.msk [vmem:[#allocation2 + $0x48] sm:$0xf] %vm1372, 0
      %1393 = vst.msk [vmem:[#allocation2 + $0x4c] sm:$0x1] %vm1374, 0
      %v1394 = vpack.c.bf16 %v1364, %v1364
      %v1395 = vpack.c.bf16 %v1365, %v1365
      %v1396 = vpack.c.bf16 %v1366, %v1366
      %v1397 = vpack.c.bf16 %v1367, %v1367
      %v1398 = vpack.c.bf16 %v1368, %v1368
      %v1399 = vpack.c.bf16 %v1369, %v1369
      %v1400 = vpack.c.bf16 %v1370, %v1370
      %v1401 = vpack.c.bf16 %v1371, %v1371
      %v1403 = vshrl.u32 %v1394, 16
      %v1405 = vrot.slane %v1403, 7
      %v1406 = vshll.u32 %v1394, 16
      %v1408 = vor.u32 %v1405, %v1406
      %v1409 = vrot.slane %v1405, 4
      %v1411 = vshrl.u32 %v1395, 16
      %v1413 = vrot.slane %v1411, 7
      %v1414 = vshll.u32 %v1395, 16
      %v1416 = vor.u32 %v1413, %v1414
      %v1417 = vrot.slane %v1413, 4
      %v1419 = vshrl.u32 %v1396, 16
      %v1421 = vrot.slane %v1419, 7
      %v1422 = vshll.u32 %v1396, 16
      %v1424 = vor.u32 %v1421, %v1422
      %v1425 = vrot.slane %v1421, 4
      %v1427 = vshrl.u32 %v1397, 16
      %v1429 = vrot.slane %v1427, 7
      %v1430 = vshll.u32 %v1397, 16
      %v1432 = vor.u32 %v1429, %v1430
      %v1433 = vrot.slane %v1429, 4
      %v1435 = vshrl.u32 %v1398, 16
      %v1437 = vrot.slane %v1435, 7
      %v1438 = vshll.u32 %v1398, 16
      %v1440 = vor.u32 %v1437, %v1438
      %v1441 = vrot.slane %v1437, 4
      %v1443 = vshrl.u32 %v1399, 16
      %v1445 = vrot.slane %v1443, 7
      %v1446 = vshll.u32 %v1399, 16
      %v1448 = vor.u32 %v1445, %v1446
      %v1449 = vrot.slane %v1445, 4
      %v1451 = vshrl.u32 %v1400, 16
      %v1453 = vrot.slane %v1451, 7
      %v1454 = vshll.u32 %v1400, 16
      %v1456 = vor.u32 %v1453, %v1454
      %v1457 = vrot.slane %v1453, 4
      %v1459 = vshrl.u32 %v1401, 16
      %v1461 = vrot.slane %v1459, 7
      %v1462 = vshll.u32 %v1401, 16
      %v1464 = vor.u32 %v1461, %v1462
      %v1465 = vrot.slane %v1461, 4
      %s1482 = scalar_lea.vmem [#allocation2], 8
      %vm1483 = vcmask 60416
      %vm1484 = vsmask.f32 7938
      %vm1485 = vmand %vm1483, %vm1484
      %v1486 = vld [vmem:[%s1482] sm:$0xf]
      %v1487 = vsel %vm1485, %v1408, %v1486
      %1488 = vst [vmem:[%s1482] sm:$0xf] %v1487
      %vm1489 = vcmask 57344
      %vm1490 = vsmask.f32 256
      %vm1491 = vmand %vm1489, %vm1490
      %v1492 = vld [vmem:[%s1482 + $0x4] sm:$0x1]
      %v1493 = vsel %vm1491, %v1409, %v1492
      %1494 = vst [vmem:[%s1482 + $0x4] sm:$0x1] %v1493
      %v1495 = vld [vmem:[%s1482 + $0x8] sm:$0xf]
      %v1496 = vsel %vm1485, %v1416, %v1495
      %1497 = vst [vmem:[%s1482 + $0x8] sm:$0xf] %v1496
      %v1498 = vld [vmem:[%s1482 + $0xc] sm:$0x1]
      %v1499 = vsel %vm1491, %v1417, %v1498
      %1500 = vst [vmem:[%s1482 + $0xc] sm:$0x1] %v1499
      %v1501 = vld [vmem:[%s1482 + $0x10] sm:$0xf]
      %v1502 = vsel %vm1485, %v1424, %v1501
      %1503 = vst [vmem:[%s1482 + $0x10] sm:$0xf] %v1502
      %v1504 = vld [vmem:[%s1482 + $0x14] sm:$0x1]
      %v1505 = vsel %vm1491, %v1425, %v1504
      %1506 = vst [vmem:[%s1482 + $0x14] sm:$0x1] %v1505
      %v1507 = vld [vmem:[%s1482 + $0x18] sm:$0xf]
      %v1508 = vsel %vm1485, %v1432, %v1507
      %1509 = vst [vmem:[%s1482 + $0x18] sm:$0xf] %v1508
      %v1510 = vld [vmem:[%s1482 + $0x1c] sm:$0x1]
      %v1511 = vsel %vm1491, %v1433, %v1510
      %1512 = vst [vmem:[%s1482 + $0x1c] sm:$0x1] %v1511
      %v1513 = vld [vmem:[%s1482 + $0x20] sm:$0xf]
      %v1514 = vsel %vm1485, %v1440, %v1513
      %1515 = vst [vmem:[%s1482 + $0x20] sm:$0xf] %v1514
      %v1516 = vld [vmem:[%s1482 + $0x24] sm:$0x1]
      %v1517 = vsel %vm1491, %v1441, %v1516
      %1518 = vst [vmem:[%s1482 + $0x24] sm:$0x1] %v1517
      %v1519 = vld [vmem:[%s1482 + $0x28] sm:$0xf]
      %v1520 = vsel %vm1485, %v1448, %v1519
      %1521 = vst [vmem:[%s1482 + $0x28] sm:$0xf] %v1520
      %v1522 = vld [vmem:[%s1482 + $0x2c] sm:$0x1]
      %v1523 = vsel %vm1491, %v1449, %v1522
      %1524 = vst [vmem:[%s1482 + $0x2c] sm:$0x1] %v1523
      %v1525 = vld [vmem:[%s1482 + $0x30] sm:$0xf]
      %v1526 = vsel %vm1485, %v1456, %v1525
      %1527 = vst [vmem:[%s1482 + $0x30] sm:$0xf] %v1526
      %v1528 = vld [vmem:[%s1482 + $0x34] sm:$0x1]
      %v1529 = vsel %vm1491, %v1457, %v1528
      %1530 = vst [vmem:[%s1482 + $0x34] sm:$0x1] %v1529
      %v1531 = vld [vmem:[%s1482 + $0x38] sm:$0xf]
      %v1532 = vsel %vm1485, %v1464, %v1531
      %1533 = vst [vmem:[%s1482 + $0x38] sm:$0xf] %v1532
      %v1534 = vld [vmem:[%s1482 + $0x3c] sm:$0x1]
      %v1535 = vsel %vm1491, %v1465, %v1534
      %1536 = vst [vmem:[%s1482 + $0x3c] sm:$0x1] %v1535
      %v1537 = vld [vmem:[#allocation2] sm:$0xf]
      %v1538 = vld [vmem:[#allocation2 + $0x8] sm:$0xf]
      %v1539 = vld [vmem:[#allocation2 + $0x10] sm:$0xf]
      %v1540 = vld [vmem:[#allocation2 + $0x18] sm:$0xf]
      %v1541 = vld [vmem:[#allocation2 + $0x20] sm:$0xf]
      %v1542 = vld [vmem:[#allocation2 + $0x28] sm:$0xf]
      %v1543 = vld [vmem:[#allocation2 + $0x30] sm:$0xf]
      %v1544 = vld [vmem:[#allocation2 + $0x38] sm:$0xf]
      %v1545 = vld [vmem:[%s3] sm:$0xf]
      %v1546 = vld [vmem:[#allocation2 + $0x4] sm:$0x1]
      %v1547 = vld [vmem:[#allocation2 + $0xc] sm:$0x1]
      %v1548 = vld [vmem:[#allocation2 + $0x14] sm:$0x1]
      %v1549 = vld [vmem:[#allocation2 + $0x1c] sm:$0x1]
      %v1550 = vld [vmem:[#allocation2 + $0x24] sm:$0x1]
      %v1551 = vld [vmem:[#allocation2 + $0x2c] sm:$0x1]
      %v1552 = vld [vmem:[#allocation2 + $0x34] sm:$0x1]
      %v1553 = vld [vmem:[#allocation2 + $0x3c] sm:$0x1]
      %v1555 = vshrl.u32 %v1537, 16
      %v1557 = vrot.slane %v1555, 4
      %v1558 = vshll.u32 %v1537, 16
      %v1560 = vrot.slane %v1558, 5
      %v1561 = vor.u32 %v1557, %v1560
      %v1562 = vrot.slane %v1561, 4
      %v1564 = vshll.u32 %v1546, 16
      %v1566 = vrot.slane %v1564, 5
      %v1567 = vsel %vm453, %v1562, %v1566
      %v1569 = vshrl.u32 %v1538, 16
      %v1571 = vrot.slane %v1569, 4
      %v1572 = vshll.u32 %v1538, 16
      %v1574 = vrot.slane %v1572, 5
      %v1575 = vor.u32 %v1571, %v1574
      %v1576 = vrot.slane %v1575, 4
      %v1578 = vshll.u32 %v1547, 16
      %v1580 = vrot.slane %v1578, 5
      %v1581 = vsel %vm453, %v1576, %v1580
      %v1583 = vshrl.u32 %v1539, 16
      %v1585 = vrot.slane %v1583, 4
      %v1586 = vshll.u32 %v1539, 16
      %v1588 = vrot.slane %v1586, 5
      %v1589 = vor.u32 %v1585, %v1588
      %v1590 = vrot.slane %v1589, 4
      %v1592 = vshll.u32 %v1548, 16
      %v1594 = vrot.slane %v1592, 5
      %v1595 = vsel %vm453, %v1590, %v1594
      %v1597 = vshrl.u32 %v1540, 16
      %v1599 = vrot.slane %v1597, 4
      %v1600 = vshll.u32 %v1540, 16
      %v1602 = vrot.slane %v1600, 5
      %v1603 = vor.u32 %v1599, %v1602
      %v1604 = vrot.slane %v1603, 4
      %v1606 = vshll.u32 %v1549, 16
      %v1608 = vrot.slane %v1606, 5
      %v1609 = vsel %vm453, %v1604, %v1608
      %v1611 = vshrl.u32 %v1541, 16
      %v1613 = vrot.slane %v1611, 4
      %v1614 = vshll.u32 %v1541, 16
      %v1616 = vrot.slane %v1614, 5
      %v1617 = vor.u32 %v1613, %v1616
      %v1618 = vrot.slane %v1617, 4
      %v1620 = vshll.u32 %v1550, 16
      %v1622 = vrot.slane %v1620, 5
      %v1623 = vsel %vm453, %v1618, %v1622
      %v1625 = vshrl.u32 %v1542, 16
      %v1627 = vrot.slane %v1625, 4
      %v1628 = vshll.u32 %v1542, 16
      %v1630 = vrot.slane %v1628, 5
      %v1631 = vor.u32 %v1627, %v1630
      %v1632 = vrot.slane %v1631, 4
      %v1634 = vshll.u32 %v1551, 16
      %v1636 = vrot.slane %v1634, 5
      %v1637 = vsel %vm453, %v1632, %v1636
      %v1639 = vshrl.u32 %v1543, 16
      %v1641 = vrot.slane %v1639, 4
      %v1642 = vshll.u32 %v1543, 16
      %v1644 = vrot.slane %v1642, 5
      %v1645 = vor.u32 %v1641, %v1644
      %v1646 = vrot.slane %v1645, 4
      %v1648 = vshll.u32 %v1552, 16
      %v1650 = vrot.slane %v1648, 5
      %v1651 = vsel %vm453, %v1646, %v1650
      %v1653 = vshrl.u32 %v1544, 16
      %v1655 = vrot.slane %v1653, 4
      %v1656 = vshll.u32 %v1544, 16
      %v1658 = vrot.slane %v1656, 5
      %v1659 = vor.u32 %v1655, %v1658
      %v1660 = vrot.slane %v1659, 4
      %v1662 = vshll.u32 %v1553, 16
      %v1664 = vrot.slane %v1662, 5
      %v1665 = vsel %vm453, %v1660, %v1664
      %s1666 = scalar_lea.vmem %s3, 4
      %v1667 = vld [vmem:[%s1666] sm:$0xf]
      %v1668 = vunpack.c.l.b16 %v1567
      %v1669 = vunpack.c.l.b16 %v1581
      %v1670 = vunpack.c.l.b16 %v1595
      %v1671 = vunpack.c.l.b16 %v1609
      %v1672 = vunpack.c.l.b16 %v1623
      %v1673 = vunpack.c.l.b16 %v1637
      %v1674 = vunpack.c.l.b16 %v1651
      %v1675 = vunpack.c.l.b16 %v1665
      %v1676 = vpack.c.b16 %v1669, %v1668
      %v1677 = vpack.c.b16 %v1671, %v1670
      %v1678 = vpack.c.b16 %v1673, %v1672
      %v1679 = vpack.c.b16 %v1675, %v1674
      %vm1680 = vcmask 64512
      %v1682 = vsel %vm1680, %v1676, 0
      %v1685 = vsel %vm1680, %v1677, 0
      %v1688 = vsel %vm1680, %v1678, 0
      %v1691 = vsel %vm1680, %v1679, 0
      %vm1693 = vcmask 1043456
      %v1695 = vsel %vm1693, %v1667, 0
      %1697 = vmatpush.bf16.msra.mxu0 0
      %1698 = vmatpush.bf16.msra.mxu0 0
      %1699 = vmatpush.bf16.msra.mxu0 0
      %1700 = vmatpush.bf16.msra.mxu0 0
      %1701 = vmatpush.bf16.msra.mxu0 0
      %1702 = vmatpush.bf16.msra.mxu0 0
      %1703 = vmatpush.bf16.msra.mxu0 0
      %1704 = vmatpush.bf16.msra.mxu0 %v1695
      %1705 = vmatmul.bf16.gmra.mxu0 %v1682
      %v1706 = vpop.f32.mrf.mxu0
      %v1707 = vadd.f32 0.0, %v1706
      %v1708 = vpop.f32.mrf.mxu0
      %v1709 = vadd.f32 0.0, %v1708
      %1710 = vmatmul.bf16.gmra.mxu0 %v1685
      %v1711 = vpop.f32.mrf.mxu0
      %v1712 = vadd.f32 0.0, %v1711
      %v1713 = vpop.f32.mrf.mxu0
      %v1714 = vadd.f32 0.0, %v1713
      %1715 = vmatmul.bf16.gmra.mxu0 %v1688
      %v1716 = vpop.f32.mrf.mxu0
      %v1717 = vadd.f32 0.0, %v1716
      %v1718 = vpop.f32.mrf.mxu0
      %v1719 = vadd.f32 0.0, %v1718
      %1720 = vmatmul.bf16.gmra.mxu0 %v1691
      %v1721 = vpop.f32.mrf.mxu0
      %v1722 = vadd.f32 0.0, %v1721
      %v1723 = vpop.f32.mrf.mxu0
      %v1724 = vadd.f32 0.0, %v1723
      %1725 = vdwg.mxu0
      %v1734 = vunpack.c.l.b16 %v1537
      %v1735 = vunpack.c.l.b16 %v1538
      %v1736 = vunpack.c.l.b16 %v1539
      %v1737 = vunpack.c.l.b16 %v1540
      %v1738 = vunpack.c.l.b16 %v1541
      %v1739 = vunpack.c.l.b16 %v1542
      %v1740 = vunpack.c.l.b16 %v1543
      %v1741 = vunpack.c.l.b16 %v1544
      %v1742 = vpack.c.b16 %v1735, %v1734
      %v1743 = vpack.c.b16 %v1737, %v1736
      %v1744 = vpack.c.b16 %v1739, %v1738
      %v1745 = vpack.c.b16 %v1741, %v1740
      %v1747 = vsel %vm1680, %v1742, 0
      %v1750 = vsel %vm1680, %v1743, 0
      %v1753 = vsel %vm1680, %v1744, 0
      %v1756 = vsel %vm1680, %v1745, 0
      %v1759 = vsel %vm1693, %v1545, 0
      %1761 = vmatpush.bf16.msra.mxu0 0
      %1762 = vmatpush.bf16.msra.mxu0 0
      %1763 = vmatpush.bf16.msra.mxu0 0
      %1764 = vmatpush.bf16.msra.mxu0 0
      %1765 = vmatpush.bf16.msra.mxu0 0
      %1766 = vmatpush.bf16.msra.mxu0 0
      %1767 = vmatpush.bf16.msra.mxu0 0
      %1768 = vmatpush.bf16.msra.mxu0 %v1759
      %1769 = vmatmul.bf16.gmra.mxu0 %v1747
      %v1770 = vpop.f32.mrf.mxu0
      %v1771 = vadd.f32 %v1707, %v1770
      %v1772 = vpop.f32.mrf.mxu0
      %v1773 = vadd.f32 %v1709, %v1772
      %1774 = vmatmul.bf16.gmra.mxu0 %v1750
      %v1775 = vpop.f32.mrf.mxu0
      %v1776 = vadd.f32 %v1712, %v1775
      %v1777 = vpop.f32.mrf.mxu0
      %v1778 = vadd.f32 %v1714, %v1777
      %1779 = vmatmul.bf16.gmra.mxu0 %v1753
      %v1780 = vpop.f32.mrf.mxu0
      %v1781 = vadd.f32 %v1717, %v1780
      %v1782 = vpop.f32.mrf.mxu0
      %v1783 = vadd.f32 %v1719, %v1782
      %1784 = vmatmul.bf16.gmra.mxu0 %v1756
      %v1785 = vpop.f32.mrf.mxu0
      %v1786 = vadd.f32 %v1722, %v1785
      %v1787 = vpop.f32.mrf.mxu0
      %v1788 = vadd.f32 %v1724, %v1787
      %1789 = vdwg.mxu0
      %v1790 = vld [vmem:[#allocation2] sm:$0xe]
      %v1791 = vld [vmem:[#allocation2 + $0x8] sm:$0xe]
      %v1792 = vld [vmem:[#allocation2 + $0x10] sm:$0xe]
      %v1793 = vld [vmem:[#allocation2 + $0x18] sm:$0xe]
      %v1794 = vld [vmem:[#allocation2 + $0x20] sm:$0xe]
      %v1795 = vld [vmem:[#allocation2 + $0x28] sm:$0xe]
      %v1796 = vld [vmem:[#allocation2 + $0x30] sm:$0xe]
      %v1797 = vld [vmem:[#allocation2 + $0x38] sm:$0xe]
      %vm1814 = vcmask 1042432
      %vm1815 = vcmask 1046532
      %vm1816 = vmor %vm1814, %vm1815
      %v1817 = vrot.slane %v1790, 5
      %v1818 = vrot.slane %v1817, 4
      %v1819 = vrot.slane %v1546, 5
      %v1820 = vsel %vm1816, %v1818, %v1819
      %v1821 = vrot.slane %v1791, 5
      %v1822 = vrot.slane %v1821, 4
      %v1823 = vrot.slane %v1547, 5
      %v1824 = vsel %vm1816, %v1822, %v1823
      %v1825 = vrot.slane %v1792, 5
      %v1826 = vrot.slane %v1825, 4
      %v1827 = vrot.slane %v1548, 5
      %v1828 = vsel %vm1816, %v1826, %v1827
      %v1829 = vrot.slane %v1793, 5
      %v1830 = vrot.slane %v1829, 4
      %v1831 = vrot.slane %v1549, 5
      %v1832 = vsel %vm1816, %v1830, %v1831
      %v1833 = vrot.slane %v1794, 5
      %v1834 = vrot.slane %v1833, 4
      %v1835 = vrot.slane %v1550, 5
      %v1836 = vsel %vm1816, %v1834, %v1835
      %v1837 = vrot.slane %v1795, 5
      %v1838 = vrot.slane %v1837, 4
      %v1839 = vrot.slane %v1551, 5
      %v1840 = vsel %vm1816, %v1838, %v1839
      %v1841 = vrot.slane %v1796, 5
      %v1842 = vrot.slane %v1841, 4
      %v1843 = vrot.slane %v1552, 5
      %v1844 = vsel %vm1816, %v1842, %v1843
      %v1845 = vrot.slane %v1797, 5
      %v1846 = vrot.slane %v1845, 4
      %v1847 = vrot.slane %v1553, 5
      %v1848 = vsel %vm1816, %v1846, %v1847
      %s1849 = scalar_lea.vmem %s3, 8
      %v1850 = vld [vmem:[%s1849] sm:$0xf]
      %v1851 = vunpack.c.l.b16 %v1820
      %v1852 = vunpack.c.l.b16 %v1824
      %v1853 = vunpack.c.l.b16 %v1828
      %v1854 = vunpack.c.l.b16 %v1832
      %v1855 = vunpack.c.l.b16 %v1836
      %v1856 = vunpack.c.l.b16 %v1840
      %v1857 = vunpack.c.l.b16 %v1844
      %v1858 = vunpack.c.l.b16 %v1848
      %v1859 = vpack.c.b16 %v1852, %v1851
      %v1860 = vpack.c.b16 %v1854, %v1853
      %v1861 = vpack.c.b16 %v1856, %v1855
      %v1862 = vpack.c.b16 %v1858, %v1857
      %v1864 = vsel %vm1680, %v1859, 0
      %v1867 = vsel %vm1680, %v1860, 0
      %v1870 = vsel %vm1680, %v1861, 0
      %v1873 = vsel %vm1680, %v1862, 0
      %v1876 = vsel %vm1693, %v1850, 0
      %1878 = vmatpush.bf16.msra.mxu0 0
      %1879 = vmatpush.bf16.msra.mxu0 0
      %1880 = vmatpush.bf16.msra.mxu0 0
      %1881 = vmatpush.bf16.msra.mxu0 0
      %1882 = vmatpush.bf16.msra.mxu0 0
      %1883 = vmatpush.bf16.msra.mxu0 0
      %1884 = vmatpush.bf16.msra.mxu0 0
      %1885 = vmatpush.bf16.msra.mxu0 %v1876
      %1886 = vmatmul.bf16.gmra.mxu0 %v1864
      %v1887 = vpop.f32.mrf.mxu0
      %v1888 = vadd.f32 0.0, %v1887
      %v1889 = vpop.f32.mrf.mxu0
      %v1890 = vadd.f32 0.0, %v1889
      %1891 = vmatmul.bf16.gmra.mxu0 %v1867
      %v1892 = vpop.f32.mrf.mxu0
      %v1893 = vadd.f32 0.0, %v1892
      %v1894 = vpop.f32.mrf.mxu0
      %v1895 = vadd.f32 0.0, %v1894
      %1896 = vmatmul.bf16.gmra.mxu0 %v1870
      %v1897 = vpop.f32.mrf.mxu0
      %v1898 = vadd.f32 0.0, %v1897
      %v1899 = vpop.f32.mrf.mxu0
      %v1900 = vadd.f32 0.0, %v1899
      %1901 = vmatmul.bf16.gmra.mxu0 %v1873
      %v1902 = vpop.f32.mrf.mxu0
      %v1903 = vadd.f32 0.0, %v1902
      %v1904 = vpop.f32.mrf.mxu0
      %v1905 = vadd.f32 0.0, %v1904
      %1906 = vdwg.mxu0
      %v1907 = vadd.f32 %v1771, %v1888
      %v1908 = vadd.f32 %v1773, %v1890
      %v1909 = vadd.f32 %v1776, %v1893
      %v1910 = vadd.f32 %v1778, %v1895
      %v1911 = vadd.f32 %v1781, %v1898
      %v1912 = vadd.f32 %v1783, %v1900
      %v1913 = vadd.f32 %v1786, %v1903
      %v1914 = vadd.f32 %v1788, %v1905
      %v1915 = vld [vmem:[%s1482] sm:$0xf]
      %v1916 = vld [vmem:[%s1482 + $0x8] sm:$0xf]
      %v1917 = vld [vmem:[%s1482 + $0x10] sm:$0xf]
      %v1918 = vld [vmem:[%s1482 + $0x18] sm:$0xf]
      %v1919 = vld [vmem:[%s1482 + $0x20] sm:$0xf]
      %v1920 = vld [vmem:[%s1482 + $0x28] sm:$0xf]
      %v1921 = vld [vmem:[%s1482 + $0x30] sm:$0xf]
      %v1922 = vld [vmem:[%s1482 + $0x38] sm:$0xf]
      %s1923 = scalar_lea.vmem %s3, 12
      %v1924 = vld [vmem:[%s1923] sm:$0xf]
      %v1933 = vunpack.c.l.b16 %v1915
      %v1934 = vunpack.c.l.b16 %v1916
      %v1935 = vunpack.c.l.b16 %v1917
      %v1936 = vunpack.c.l.b16 %v1918
      %v1937 = vunpack.c.l.b16 %v1919
      %v1938 = vunpack.c.l.b16 %v1920
      %v1939 = vunpack.c.l.b16 %v1921
      %v1940 = vunpack.c.l.b16 %v1922
      %v1941 = vpack.c.b16 %v1934, %v1933
      %v1942 = vpack.c.b16 %v1936, %v1935
      %v1943 = vpack.c.b16 %v1938, %v1937
      %v1944 = vpack.c.b16 %v1940, %v1939
      %v1946 = vsel %vm1680, %v1941, 0
      %v1949 = vsel %vm1680, %v1942, 0
      %v1952 = vsel %vm1680, %v1943, 0
      %v1955 = vsel %vm1680, %v1944, 0
      %v1958 = vsel %vm1693, %v1924, 0
      %1960 = vmatpush.bf16.msra.mxu0 0
      %1961 = vmatpush.bf16.msra.mxu0 0
      %1962 = vmatpush.bf16.msra.mxu0 0
      %1963 = vmatpush.bf16.msra.mxu0 0
      %1964 = vmatpush.bf16.msra.mxu0 0
      %1965 = vmatpush.bf16.msra.mxu0 0
      %1966 = vmatpush.bf16.msra.mxu0 0
      %1967 = vmatpush.bf16.msra.mxu0 %v1958
      %1968 = vmatmul.bf16.gmra.mxu0 %v1946
      %v1969 = vpop.f32.mrf.mxu0
      %v1970 = vadd.f32 0.0, %v1969
      %v1971 = vpop.f32.mrf.mxu0
      %v1972 = vadd.f32 0.0, %v1971
      %1973 = vmatmul.bf16.gmra.mxu0 %v1949
      %v1974 = vpop.f32.mrf.mxu0
      %v1975 = vadd.f32 0.0, %v1974
      %v1976 = vpop.f32.mrf.mxu0
      %v1977 = vadd.f32 0.0, %v1976
      %1978 = vmatmul.bf16.gmra.mxu0 %v1952
      %v1979 = vpop.f32.mrf.mxu0
      %v1980 = vadd.f32 0.0, %v1979
      %v1981 = vpop.f32.mrf.mxu0
      %v1982 = vadd.f32 0.0, %v1981
      %1983 = vmatmul.bf16.gmra.mxu0 %v1955
      %v1984 = vpop.f32.mrf.mxu0
      %v1985 = vadd.f32 0.0, %v1984
      %v1986 = vpop.f32.mrf.mxu0
      %v1987 = vadd.f32 0.0, %v1986
      %1988 = vdwg.mxu0
      %v1989 = vadd.f32 %v1907, %v1970
      %v1990 = vadd.f32 %v1908, %v1972
      %v1991 = vadd.f32 %v1909, %v1975
      %v1992 = vadd.f32 %v1910, %v1977
      %v1993 = vadd.f32 %v1911, %v1980
      %v1994 = vadd.f32 %v1912, %v1982
      %v1995 = vadd.f32 %v1913, %v1985
      %v1996 = vadd.f32 %v1914, %v1987
      %v1997 = vld [vmem:[%s1482] sm:$0xf]
      %v1998 = vld [vmem:[%s1482 + $0x4] sm:$0x1]
      %v1999 = vld [vmem:[%s1482 + $0x8] sm:$0xf]
      %v2000 = vld [vmem:[%s1482 + $0xc] sm:$0x1]
      %v2001 = vld [vmem:[%s1482 + $0x10] sm:$0xf]
      %v2002 = vld [vmem:[%s1482 + $0x14] sm:$0x1]
      %v2003 = vld [vmem:[%s1482 + $0x18] sm:$0xf]
      %v2004 = vld [vmem:[%s1482 + $0x1c] sm:$0x1]
      %v2005 = vld [vmem:[%s1482 + $0x20] sm:$0xf]
      %v2006 = vld [vmem:[%s1482 + $0x24] sm:$0x1]
      %v2007 = vld [vmem:[%s1482 + $0x28] sm:$0xf]
      %v2008 = vld [vmem:[%s1482 + $0x2c] sm:$0x1]
      %v2009 = vld [vmem:[%s1482 + $0x30] sm:$0xf]
      %v2010 = vld [vmem:[%s1482 + $0x34] sm:$0x1]
      %v2011 = vld [vmem:[%s1482 + $0x38] sm:$0xf]
      %v2012 = vld [vmem:[%s1482 + $0x3c] sm:$0x1]
      %v2014 = vshrl.u32 %v1997, 16
      %v2016 = vrot.slane %v2014, 4
      %v2017 = vshll.u32 %v1997, 16
      %v2019 = vrot.slane %v2017, 5
      %v2020 = vor.u32 %v2016, %v2019
      %v2021 = vrot.slane %v2020, 4
      %v2023 = vshll.u32 %v1998, 16
      %v2025 = vrot.slane %v2023, 5
      %v2026 = vsel %vm453, %v2021, %v2025
      %v2028 = vshrl.u32 %v1999, 16
      %v2030 = vrot.slane %v2028, 4
      %v2031 = vshll.u32 %v1999, 16
      %v2033 = vrot.slane %v2031, 5
      %v2034 = vor.u32 %v2030, %v2033
      %v2035 = vrot.slane %v2034, 4
      %v2037 = vshll.u32 %v2000, 16
      %v2039 = vrot.slane %v2037, 5
      %v2040 = vsel %vm453, %v2035, %v2039
      %v2042 = vshrl.u32 %v2001, 16
      %v2044 = vrot.slane %v2042, 4
      %v2045 = vshll.u32 %v2001, 16
      %v2047 = vrot.slane %v2045, 5
      %v2048 = vor.u32 %v2044, %v2047
      %v2049 = vrot.slane %v2048, 4
      %v2051 = vshll.u32 %v2002, 16
      %v2053 = vrot.slane %v2051, 5
      %v2054 = vsel %vm453, %v2049, %v2053
      %v2056 = vshrl.u32 %v2003, 16
      %v2058 = vrot.slane %v2056, 4
      %v2059 = vshll.u32 %v2003, 16
      %v2061 = vrot.slane %v2059, 5
      %v2062 = vor.u32 %v2058, %v2061
      %v2063 = vrot.slane %v2062, 4
      %v2065 = vshll.u32 %v2004, 16
      %v2067 = vrot.slane %v2065, 5
      %v2068 = vsel %vm453, %v2063, %v2067
      %v2070 = vshrl.u32 %v2005, 16
      %v2072 = vrot.slane %v2070, 4
      %v2073 = vshll.u32 %v2005, 16
      %v2075 = vrot.slane %v2073, 5
      %v2076 = vor.u32 %v2072, %v2075
      %v2077 = vrot.slane %v2076, 4
      %v2079 = vshll.u32 %v2006, 16
      %v2081 = vrot.slane %v2079, 5
      %v2082 = vsel %vm453, %v2077, %v2081
      %v2084 = vshrl.u32 %v2007, 16
      %v2086 = vrot.slane %v2084, 4
      %v2087 = vshll.u32 %v2007, 16
      %v2089 = vrot.slane %v2087, 5
      %v2090 = vor.u32 %v2086, %v2089
      %v2091 = vrot.slane %v2090, 4
      %v2093 = vshll.u32 %v2008, 16
      %v2095 = vrot.slane %v2093, 5
      %v2096 = vsel %vm453, %v2091, %v2095
      %v2098 = vshrl.u32 %v2009, 16
      %v2100 = vrot.slane %v2098, 4
      %v2101 = vshll.u32 %v2009, 16
      %v2103 = vrot.slane %v2101, 5
      %v2104 = vor.u32 %v2100, %v2103
      %v2105 = vrot.slane %v2104, 4
      %v2107 = vshll.u32 %v2010, 16
      %v2109 = vrot.slane %v2107, 5
      %v2110 = vsel %vm453, %v2105, %v2109
      %v2112 = vshrl.u32 %v2011, 16
      %v2114 = vrot.slane %v2112, 4
      %v2115 = vshll.u32 %v2011, 16
      %v2117 = vrot.slane %v2115, 5
      %v2118 = vor.u32 %v2114, %v2117
      %v2119 = vrot.slane %v2118, 4
      %v2121 = vshll.u32 %v2012, 16
      %v2123 = vrot.slane %v2121, 5
      %v2124 = vsel %vm453, %v2119, %v2123
      %s2125 = scalar_lea.vmem %s3, 16
      %v2126 = vld [vmem:[%s2125] sm:$0xf]
      %v2127 = vunpack.c.l.b16 %v2026
      %v2128 = vunpack.c.l.b16 %v2040
      %v2129 = vunpack.c.l.b16 %v2054
      %v2130 = vunpack.c.l.b16 %v2068
      %v2131 = vunpack.c.l.b16 %v2082
      %v2132 = vunpack.c.l.b16 %v2096
      %v2133 = vunpack.c.l.b16 %v2110
      %v2134 = vunpack.c.l.b16 %v2124
      %v2135 = vpack.c.b16 %v2128, %v2127
      %v2136 = vpack.c.b16 %v2130, %v2129
      %v2137 = vpack.c.b16 %v2132, %v2131
      %v2138 = vpack.c.b16 %v2134, %v2133
      %v2140 = vsel %vm1680, %v2135, 0
      %v2143 = vsel %vm1680, %v2136, 0
      %v2146 = vsel %vm1680, %v2137, 0
      %v2149 = vsel %vm1680, %v2138, 0
      %v2152 = vsel %vm1693, %v2126, 0
      %2154 = vmatpush.bf16.msra.mxu0 0
      %2155 = vmatpush.bf16.msra.mxu0 0
      %2156 = vmatpush.bf16.msra.mxu0 0
      %2157 = vmatpush.bf16.msra.mxu0 0
      %2158 = vmatpush.bf16.msra.mxu0 0
      %2159 = vmatpush.bf16.msra.mxu0 0
      %2160 = vmatpush.bf16.msra.mxu0 0
      %2161 = vmatpush.bf16.msra.mxu0 %v2152
      %2162 = vmatmul.bf16.gmra.mxu0 %v2140
      %v2163 = vpop.f32.mrf.mxu0
      %v2164 = vadd.f32 0.0, %v2163
      %v2165 = vpop.f32.mrf.mxu0
      %v2166 = vadd.f32 0.0, %v2165
      %2167 = vmatmul.bf16.gmra.mxu0 %v2143
      %v2168 = vpop.f32.mrf.mxu0
      %v2169 = vadd.f32 0.0, %v2168
      %v2170 = vpop.f32.mrf.mxu0
      %v2171 = vadd.f32 0.0, %v2170
      %2172 = vmatmul.bf16.gmra.mxu0 %v2146
      %v2173 = vpop.f32.mrf.mxu0
      %v2174 = vadd.f32 0.0, %v2173
      %v2175 = vpop.f32.mrf.mxu0
      %v2176 = vadd.f32 0.0, %v2175
      %2177 = vmatmul.bf16.gmra.mxu0 %v2149
      %v2178 = vpop.f32.mrf.mxu0
      %v2179 = vadd.f32 0.0, %v2178
      %v2180 = vpop.f32.mrf.mxu0
      %v2181 = vadd.f32 0.0, %v2180
      %2182 = vdwg.mxu0
      %v2183 = vadd.f32 %v1989, %v2164
      %v2184 = vadd.f32 %v1990, %v2166
      %v2185 = vadd.f32 %v1991, %v2169
      %v2186 = vadd.f32 %v1992, %v2171
      %v2187 = vadd.f32 %v1993, %v2174
      %v2188 = vadd.f32 %v1994, %v2176
      %v2189 = vadd.f32 %v1995, %v2179
      %v2190 = vadd.f32 %v1996, %v2181
      %v2191 = vld [vmem:[%s1482] sm:$0xe]
      %v2192 = vld [vmem:[%s1482 + $0x8] sm:$0xe]
      %v2193 = vld [vmem:[%s1482 + $0x10] sm:$0xe]
      %v2194 = vld [vmem:[%s1482 + $0x18] sm:$0xe]
      %v2195 = vld [vmem:[%s1482 + $0x20] sm:$0xe]
      %v2196 = vld [vmem:[%s1482 + $0x28] sm:$0xe]
      %v2197 = vld [vmem:[%s1482 + $0x30] sm:$0xe]
      %v2198 = vld [vmem:[%s1482 + $0x38] sm:$0xe]
      %v2215 = vrot.slane %v2191, 5
      %v2216 = vrot.slane %v2215, 4
      %v2217 = vrot.slane %v1998, 5
      %v2218 = vsel %vm1816, %v2216, %v2217
      %v2219 = vrot.slane %v2192, 5
      %v2220 = vrot.slane %v2219, 4
      %v2221 = vrot.slane %v2000, 5
      %v2222 = vsel %vm1816, %v2220, %v2221
      %v2223 = vrot.slane %v2193, 5
      %v2224 = vrot.slane %v2223, 4
      %v2225 = vrot.slane %v2002, 5
      %v2226 = vsel %vm1816, %v2224, %v2225
      %v2227 = vrot.slane %v2194, 5
      %v2228 = vrot.slane %v2227, 4
      %v2229 = vrot.slane %v2004, 5
      %v2230 = vsel %vm1816, %v2228, %v2229
      %v2231 = vrot.slane %v2195, 5
      %v2232 = vrot.slane %v2231, 4
      %v2233 = vrot.slane %v2006, 5
      %v2234 = vsel %vm1816, %v2232, %v2233
      %v2235 = vrot.slane %v2196, 5
      %v2236 = vrot.slane %v2235, 4
      %v2237 = vrot.slane %v2008, 5
      %v2238 = vsel %vm1816, %v2236, %v2237
      %v2239 = vrot.slane %v2197, 5
      %v2240 = vrot.slane %v2239, 4
      %v2241 = vrot.slane %v2010, 5
      %v2242 = vsel %vm1816, %v2240, %v2241
      %v2243 = vrot.slane %v2198, 5
      %v2244 = vrot.slane %v2243, 4
      %v2245 = vrot.slane %v2012, 5
      %v2246 = vsel %vm1816, %v2244, %v2245
      %s2247 = scalar_lea.vmem %s3, 20
      %v2248 = vld [vmem:[%s2247] sm:$0xf]
      %v2249 = vunpack.c.l.b16 %v2218
      %v2250 = vunpack.c.l.b16 %v2222
      %v2251 = vunpack.c.l.b16 %v2226
      %v2252 = vunpack.c.l.b16 %v2230
      %v2253 = vunpack.c.l.b16 %v2234
      %v2254 = vunpack.c.l.b16 %v2238
      %v2255 = vunpack.c.l.b16 %v2242
      %v2256 = vunpack.c.l.b16 %v2246
      %v2257 = vpack.c.b16 %v2250, %v2249
      %v2258 = vpack.c.b16 %v2252, %v2251
      %v2259 = vpack.c.b16 %v2254, %v2253
      %v2260 = vpack.c.b16 %v2256, %v2255
      %v2262 = vsel %vm1680, %v2257, 0
      %v2265 = vsel %vm1680, %v2258, 0
      %v2268 = vsel %vm1680, %v2259, 0
      %v2271 = vsel %vm1680, %v2260, 0
      %v2274 = vsel %vm1693, %v2248, 0
      %2276 = vmatpush.bf16.msra.mxu0 0
      %2277 = vmatpush.bf16.msra.mxu0 0
      %2278 = vmatpush.bf16.msra.mxu0 0
      %2279 = vmatpush.bf16.msra.mxu0 0
      %2280 = vmatpush.bf16.msra.mxu0 0
      %2281 = vmatpush.bf16.msra.mxu0 0
      %2282 = vmatpush.bf16.msra.mxu0 0
      %2283 = vmatpush.bf16.msra.mxu0 %v2274
      %2284 = vmatmul.bf16.gmra.mxu0 %v2262
      %v2285 = vpop.f32.mrf.mxu0
      %v2286 = vadd.f32 0.0, %v2285
      %v2287 = vpop.f32.mrf.mxu0
      %v2288 = vadd.f32 0.0, %v2287
      %2289 = vmatmul.bf16.gmra.mxu0 %v2265
      %v2290 = vpop.f32.mrf.mxu0
      %v2291 = vadd.f32 0.0, %v2290
      %v2292 = vpop.f32.mrf.mxu0
      %v2293 = vadd.f32 0.0, %v2292
      %2294 = vmatmul.bf16.gmra.mxu0 %v2268
      %v2295 = vpop.f32.mrf.mxu0
      %v2296 = vadd.f32 0.0, %v2295
      %v2297 = vpop.f32.mrf.mxu0
      %v2298 = vadd.f32 0.0, %v2297
      %2299 = vmatmul.bf16.gmra.mxu0 %v2271
      %v2300 = vpop.f32.mrf.mxu0
      %v2301 = vadd.f32 0.0, %v2300
      %v2302 = vpop.f32.mrf.mxu0
      %v2303 = vadd.f32 0.0, %v2302
      %2304 = vdwg.mxu0
      %v2305 = vadd.f32 %v2183, %v2286
      %v2306 = vadd.f32 %v2184, %v2288
      %v2307 = vadd.f32 %v2185, %v2291
      %v2308 = vadd.f32 %v2186, %v2293
      %v2309 = vadd.f32 %v2187, %v2296
      %v2310 = vadd.f32 %v2188, %v2298
      %v2311 = vadd.f32 %v2189, %v2301
      %v2312 = vadd.f32 %v2190, %v2303
      %s2313 = scalar_lea.vmem [#allocation2], 16
      %v2314 = vld [vmem:[%s2313] sm:$0xf]
      %v2315 = vld [vmem:[%s2313 + $0x8] sm:$0xf]
      %v2316 = vld [vmem:[%s2313 + $0x10] sm:$0xf]
      %v2317 = vld [vmem:[%s2313 + $0x18] sm:$0xf]
      %v2318 = vld [vmem:[%s2313 + $0x20] sm:$0xf]
      %v2319 = vld [vmem:[%s2313 + $0x28] sm:$0xf]
      %v2320 = vld [vmem:[%s2313 + $0x30] sm:$0xf]
      %v2321 = vld [vmem:[%s2313 + $0x38] sm:$0xf]
      %s2322 = scalar_lea.vmem %s3, 24
      %v2323 = vld [vmem:[%s2322] sm:$0xf]
      %v2332 = vunpack.c.l.b16 %v2314
      %v2333 = vunpack.c.l.b16 %v2315
      %v2334 = vunpack.c.l.b16 %v2316
      %v2335 = vunpack.c.l.b16 %v2317
      %v2336 = vunpack.c.l.b16 %v2318
      %v2337 = vunpack.c.l.b16 %v2319
      %v2338 = vunpack.c.l.b16 %v2320
      %v2339 = vunpack.c.l.b16 %v2321
      %v2340 = vpack.c.b16 %v2333, %v2332
      %v2341 = vpack.c.b16 %v2335, %v2334
      %v2342 = vpack.c.b16 %v2337, %v2336
      %v2343 = vpack.c.b16 %v2339, %v2338
      %v2345 = vsel %vm1680, %v2340, 0
      %v2348 = vsel %vm1680, %v2341, 0
      %v2351 = vsel %vm1680, %v2342, 0
      %v2354 = vsel %vm1680, %v2343, 0
      %v2357 = vsel %vm1693, %v2323, 0
      %2359 = vmatpush.bf16.msra.mxu0 0
      %2360 = vmatpush.bf16.msra.mxu0 0
      %2361 = vmatpush.bf16.msra.mxu0 0
      %2362 = vmatpush.bf16.msra.mxu0 0
      %2363 = vmatpush.bf16.msra.mxu0 0
      %2364 = vmatpush.bf16.msra.mxu0 0
      %2365 = vmatpush.bf16.msra.mxu0 0
      %2366 = vmatpush.bf16.msra.mxu0 %v2357
      %2367 = vmatmul.bf16.gmra.mxu0 %v2345
      %v2368 = vpop.f32.mrf.mxu0
      %v2369 = vadd.f32 0.0, %v2368
      %v2370 = vpop.f32.mrf.mxu0
      %v2371 = vadd.f32 0.0, %v2370
      %2372 = vmatmul.bf16.gmra.mxu0 %v2348
      %v2373 = vpop.f32.mrf.mxu0
      %v2374 = vadd.f32 0.0, %v2373
      %v2375 = vpop.f32.mrf.mxu0
      %v2376 = vadd.f32 0.0, %v2375
      %2377 = vmatmul.bf16.gmra.mxu0 %v2351
      %v2378 = vpop.f32.mrf.mxu0
      %v2379 = vadd.f32 0.0, %v2378
      %v2380 = vpop.f32.mrf.mxu0
      %v2381 = vadd.f32 0.0, %v2380
      %2382 = vmatmul.bf16.gmra.mxu0 %v2354
      %v2383 = vpop.f32.mrf.mxu0
      %v2384 = vadd.f32 0.0, %v2383
      %v2385 = vpop.f32.mrf.mxu0
      %v2386 = vadd.f32 0.0, %v2385
      %2387 = vdwg.mxu0
      %v2388 = vadd.f32 %v2305, %v2369
      %v2389 = vadd.f32 %v2306, %v2371
      %v2390 = vadd.f32 %v2307, %v2374
      %v2391 = vadd.f32 %v2308, %v2376
      %v2392 = vadd.f32 %v2309, %v2379
      %v2393 = vadd.f32 %v2310, %v2381
      %v2394 = vadd.f32 %v2311, %v2384
      %v2395 = vadd.f32 %v2312, %v2386
      %v2396 = vld [vmem:[%s2313] sm:$0xf]
      %v2397 = vld [vmem:[%s2313 + $0x4] sm:$0x1]
      %v2398 = vld [vmem:[%s2313 + $0x8] sm:$0xf]
      %v2399 = vld [vmem:[%s2313 + $0xc] sm:$0x1]
      %v2400 = vld [vmem:[%s2313 + $0x10] sm:$0xf]
      %v2401 = vld [vmem:[%s2313 + $0x14] sm:$0x1]
      %v2402 = vld [vmem:[%s2313 + $0x18] sm:$0xf]
      %v2403 = vld [vmem:[%s2313 + $0x1c] sm:$0x1]
      %v2404 = vld [vmem:[%s2313 + $0x20] sm:$0xf]
      %v2405 = vld [vmem:[%s2313 + $0x24] sm:$0x1]
      %v2406 = vld [vmem:[%s2313 + $0x28] sm:$0xf]
      %v2407 = vld [vmem:[%s2313 + $0x2c] sm:$0x1]
      %v2408 = vld [vmem:[%s2313 + $0x30] sm:$0xf]
      %v2409 = vld [vmem:[%s2313 + $0x34] sm:$0x1]
      %v2410 = vld [vmem:[%s2313 + $0x38] sm:$0xf]
      %v2411 = vld [vmem:[%s2313 + $0x3c] sm:$0x1]
      %v2413 = vshrl.u32 %v2396, 16
      %v2415 = vrot.slane %v2413, 4
      %v2416 = vshll.u32 %v2396, 16
      %v2418 = vrot.slane %v2416, 5
      %v2419 = vor.u32 %v2415, %v2418
      %v2420 = vrot.slane %v2419, 4
      %v2422 = vshll.u32 %v2397, 16
      %v2424 = vrot.slane %v2422, 5
      %v2425 = vsel %vm453, %v2420, %v2424
      %v2427 = vshrl.u32 %v2398, 16
      %v2429 = vrot.slane %v2427, 4
      %v2430 = vshll.u32 %v2398, 16
      %v2432 = vrot.slane %v2430, 5
      %v2433 = vor.u32 %v2429, %v2432
      %v2434 = vrot.slane %v2433, 4
      %v2436 = vshll.u32 %v2399, 16
      %v2438 = vrot.slane %v2436, 5
      %v2439 = vsel %vm453, %v2434, %v2438
      %v2441 = vshrl.u32 %v2400, 16
      %v2443 = vrot.slane %v2441, 4
      %v2444 = vshll.u32 %v2400, 16
      %v2446 = vrot.slane %v2444, 5
      %v2447 = vor.u32 %v2443, %v2446
      %v2448 = vrot.slane %v2447, 4
      %v2450 = vshll.u32 %v2401, 16
      %v2452 = vrot.slane %v2450, 5
      %v2453 = vsel %vm453, %v2448, %v2452
      %v2455 = vshrl.u32 %v2402, 16
      %v2457 = vrot.slane %v2455, 4
      %v2458 = vshll.u32 %v2402, 16
      %v2460 = vrot.slane %v2458, 5
      %v2461 = vor.u32 %v2457, %v2460
      %v2462 = vrot.slane %v2461, 4
      %v2464 = vshll.u32 %v2403, 16
      %v2466 = vrot.slane %v2464, 5
      %v2467 = vsel %vm453, %v2462, %v2466
      %v2469 = vshrl.u32 %v2404, 16
      %v2471 = vrot.slane %v2469, 4
      %v2472 = vshll.u32 %v2404, 16
      %v2474 = vrot.slane %v2472, 5
      %v2475 = vor.u32 %v2471, %v2474
      %v2476 = vrot.slane %v2475, 4
      %v2478 = vshll.u32 %v2405, 16
      %v2480 = vrot.slane %v2478, 5
      %v2481 = vsel %vm453, %v2476, %v2480
      %v2483 = vshrl.u32 %v2406, 16
      %v2485 = vrot.slane %v2483, 4
      %v2486 = vshll.u32 %v2406, 16
      %v2488 = vrot.slane %v2486, 5
      %v2489 = vor.u32 %v2485, %v2488
      %v2490 = vrot.slane %v2489, 4
      %v2492 = vshll.u32 %v2407, 16
      %v2494 = vrot.slane %v2492, 5
      %v2495 = vsel %vm453, %v2490, %v2494
      %v2497 = vshrl.u32 %v2408, 16
      %v2499 = vrot.slane %v2497, 4
      %v2500 = vshll.u32 %v2408, 16
      %v2502 = vrot.slane %v2500, 5
      %v2503 = vor.u32 %v2499, %v2502
      %v2504 = vrot.slane %v2503, 4
      %v2506 = vshll.u32 %v2409, 16
      %v2508 = vrot.slane %v2506, 5
      %v2509 = vsel %vm453, %v2504, %v2508
      %v2511 = vshrl.u32 %v2410, 16
      %v2513 = vrot.slane %v2511, 4
      %v2514 = vshll.u32 %v2410, 16
      %v2516 = vrot.slane %v2514, 5
      %v2517 = vor.u32 %v2513, %v2516
      %v2518 = vrot.slane %v2517, 4
      %v2520 = vshll.u32 %v2411, 16
      %v2522 = vrot.slane %v2520, 5
      %v2523 = vsel %vm453, %v2518, %v2522
      %s2524 = scalar_lea.vmem %s3, 28
      %v2525 = vld [vmem:[%s2524] sm:$0xf]
      %v2526 = vunpack.c.l.b16 %v2425
      %v2527 = vunpack.c.l.b16 %v2439
      %v2528 = vunpack.c.l.b16 %v2453
      %v2529 = vunpack.c.l.b16 %v2467
      %v2530 = vunpack.c.l.b16 %v2481
      %v2531 = vunpack.c.l.b16 %v2495
      %v2532 = vunpack.c.l.b16 %v2509
      %v2533 = vunpack.c.l.b16 %v2523
      %v2534 = vpack.c.b16 %v2527, %v2526
      %v2535 = vpack.c.b16 %v2529, %v2528
      %v2536 = vpack.c.b16 %v2531, %v2530
      %v2537 = vpack.c.b16 %v2533, %v2532
      %v2539 = vsel %vm1680, %v2534, 0
      %v2542 = vsel %vm1680, %v2535, 0
      %v2545 = vsel %vm1680, %v2536, 0
      %v2548 = vsel %vm1680, %v2537, 0
      %v2551 = vsel %vm1693, %v2525, 0
      %2553 = vmatpush.bf16.msra.mxu0 0
      %2554 = vmatpush.bf16.msra.mxu0 0
      %2555 = vmatpush.bf16.msra.mxu0 0
      %2556 = vmatpush.bf16.msra.mxu0 0
      %2557 = vmatpush.bf16.msra.mxu0 0
      %2558 = vmatpush.bf16.msra.mxu0 0
      %2559 = vmatpush.bf16.msra.mxu0 0
      %2560 = vmatpush.bf16.msra.mxu0 %v2551
      %2561 = vmatmul.bf16.gmra.mxu0 %v2539
      %v2562 = vpop.f32.mrf.mxu0
      %v2563 = vadd.f32 0.0, %v2562
      %v2564 = vpop.f32.mrf.mxu0
      %v2565 = vadd.f32 0.0, %v2564
      %2566 = vmatmul.bf16.gmra.mxu0 %v2542
      %v2567 = vpop.f32.mrf.mxu0
      %v2568 = vadd.f32 0.0, %v2567
      %v2569 = vpop.f32.mrf.mxu0
      %v2570 = vadd.f32 0.0, %v2569
      %2571 = vmatmul.bf16.gmra.mxu0 %v2545
      %v2572 = vpop.f32.mrf.mxu0
      %v2573 = vadd.f32 0.0, %v2572
      %v2574 = vpop.f32.mrf.mxu0
      %v2575 = vadd.f32 0.0, %v2574
      %2576 = vmatmul.bf16.gmra.mxu0 %v2548
      %v2577 = vpop.f32.mrf.mxu0
      %v2578 = vadd.f32 0.0, %v2577
      %v2579 = vpop.f32.mrf.mxu0
      %v2580 = vadd.f32 0.0, %v2579
      %2581 = vdwg.mxu0
      %v2582 = vadd.f32 %v2388, %v2563
      %v2583 = vadd.f32 %v2389, %v2565
      %v2584 = vadd.f32 %v2390, %v2568
      %v2585 = vadd.f32 %v2391, %v2570
      %v2586 = vadd.f32 %v2392, %v2573
      %v2587 = vadd.f32 %v2393, %v2575
      %v2588 = vadd.f32 %v2394, %v2578
      %v2589 = vadd.f32 %v2395, %v2580
      %v2590 = vld [vmem:[%s2313] sm:$0xe]
      %v2591 = vld [vmem:[%s2313 + $0x8] sm:$0xe]
      %v2592 = vld [vmem:[%s2313 + $0x10] sm:$0xe]
      %v2593 = vld [vmem:[%s2313 + $0x18] sm:$0xe]
      %v2594 = vld [vmem:[%s2313 + $0x20] sm:$0xe]
      %v2595 = vld [vmem:[%s2313 + $0x28] sm:$0xe]
      %v2596 = vld [vmem:[%s2313 + $0x30] sm:$0xe]
      %v2597 = vld [vmem:[%s2313 + $0x38] sm:$0xe]
      %v2614 = vrot.slane %v2590, 5
      %v2615 = vrot.slane %v2614, 4
      %v2616 = vrot.slane %v2397, 5
      %v2617 = vsel %vm1816, %v2615, %v2616
      %v2618 = vrot.slane %v2591, 5
      %v2619 = vrot.slane %v2618, 4
      %v2620 = vrot.slane %v2399, 5
      %v2621 = vsel %vm1816, %v2619, %v2620
      %v2622 = vrot.slane %v2592, 5
      %v2623 = vrot.slane %v2622, 4
      %v2624 = vrot.slane %v2401, 5
      %v2625 = vsel %vm1816, %v2623, %v2624
      %v2626 = vrot.slane %v2593, 5
      %v2627 = vrot.slane %v2626, 4
      %v2628 = vrot.slane %v2403, 5
      %v2629 = vsel %vm1816, %v2627, %v2628
      %v2630 = vrot.slane %v2594, 5
      %v2631 = vrot.slane %v2630, 4
      %v2632 = vrot.slane %v2405, 5
      %v2633 = vsel %vm1816, %v2631, %v2632
      %v2634 = vrot.slane %v2595, 5
      %v2635 = vrot.slane %v2634, 4
      %v2636 = vrot.slane %v2407, 5
      %v2637 = vsel %vm1816, %v2635, %v2636
      %v2638 = vrot.slane %v2596, 5
      %v2639 = vrot.slane %v2638, 4
      %v2640 = vrot.slane %v2409, 5
      %v2641 = vsel %vm1816, %v2639, %v2640
      %v2642 = vrot.slane %v2597, 5
      %v2643 = vrot.slane %v2642, 4
      %v2644 = vrot.slane %v2411, 5
      %v2645 = vsel %vm1816, %v2643, %v2644
      %s2646 = scalar_lea.vmem %s3, 32
      %v2647 = vld [vmem:[%s2646] sm:$0xf]
      %v2648 = vunpack.c.l.b16 %v2617
      %v2649 = vunpack.c.l.b16 %v2621
      %v2650 = vunpack.c.l.b16 %v2625
      %v2651 = vunpack.c.l.b16 %v2629
      %v2652 = vunpack.c.l.b16 %v2633
      %v2653 = vunpack.c.l.b16 %v2637
      %v2654 = vunpack.c.l.b16 %v2641
      %v2655 = vunpack.c.l.b16 %v2645
      %v2656 = vpack.c.b16 %v2649, %v2648
      %v2657 = vpack.c.b16 %v2651, %v2650
      %v2658 = vpack.c.b16 %v2653, %v2652
      %v2659 = vpack.c.b16 %v2655, %v2654
      %v2661 = vsel %vm1680, %v2656, 0
      %v2664 = vsel %vm1680, %v2657, 0
      %v2667 = vsel %vm1680, %v2658, 0
      %v2670 = vsel %vm1680, %v2659, 0
      %v2673 = vsel %vm1693, %v2647, 0
      %2675 = vmatpush.bf16.msra.mxu0 0
      %2676 = vmatpush.bf16.msra.mxu0 0
      %2677 = vmatpush.bf16.msra.mxu0 0
      %2678 = vmatpush.bf16.msra.mxu0 0
      %2679 = vmatpush.bf16.msra.mxu0 0
      %2680 = vmatpush.bf16.msra.mxu0 0
      %2681 = vmatpush.bf16.msra.mxu0 0
      %2682 = vmatpush.bf16.msra.mxu0 %v2673
      %2683 = vmatmul.bf16.gmra.mxu0 %v2661
      %v2684 = vpop.f32.mrf.mxu0
      %v2685 = vadd.f32 0.0, %v2684
      %v2686 = vpop.f32.mrf.mxu0
      %v2687 = vadd.f32 0.0, %v2686
      %2688 = vmatmul.bf16.gmra.mxu0 %v2664
      %v2689 = vpop.f32.mrf.mxu0
      %v2690 = vadd.f32 0.0, %v2689
      %v2691 = vpop.f32.mrf.mxu0
      %v2692 = vadd.f32 0.0, %v2691
      %2693 = vmatmul.bf16.gmra.mxu0 %v2667
      %v2694 = vpop.f32.mrf.mxu0
      %v2695 = vadd.f32 0.0, %v2694
      %v2696 = vpop.f32.mrf.mxu0
      %v2697 = vadd.f32 0.0, %v2696
      %2698 = vmatmul.bf16.gmra.mxu0 %v2670
      %v2699 = vpop.f32.mrf.mxu0
      %v2700 = vadd.f32 0.0, %v2699
      %v2701 = vpop.f32.mrf.mxu0
      %v2702 = vadd.f32 0.0, %v2701
      %2703 = vdwg.mxu0
      %v2704 = vadd.f32 %v2582, %v2685
      %v2705 = vadd.f32 %v2583, %v2687
      %v2706 = vadd.f32 %v2584, %v2690
      %v2707 = vadd.f32 %v2585, %v2692
      %v2708 = vadd.f32 %v2586, %v2695
      %v2709 = vadd.f32 %v2587, %v2697
      %v2710 = vadd.f32 %v2588, %v2700
      %v2711 = vadd.f32 %v2589, %v2702
      %v2712 = vld [vmem:[%s4] sm:$0x1]
      %v2714 = vperm.slane %v2712, 0
      %v2716 = vadd.f32 %v2704, %v2714
      %v2717 = vadd.f32 %v2705, %v2714
      %v2718 = vadd.f32 %v2706, %v2714
      %v2719 = vadd.f32 %v2707, %v2714
      %v2720 = vadd.f32 %v2708, %v2714
      %v2721 = vadd.f32 %v2709, %v2714
      %v2722 = vadd.f32 %v2710, %v2714
      %v2723 = vadd.f32 %v2711, %v2714
      %v2724 = vld [vmem:[%s715] sm:$0xf]
      %v2725 = vld [vmem:[%s715 + $0x8] sm:$0xf]
      %v2726 = vld [vmem:[%s715 + $0x10] sm:$0xf]
      %v2727 = vld [vmem:[%s715 + $0x18] sm:$0xf]
      %v2728 = vld [vmem:[%s715 + $0x20] sm:$0xf]
      %v2729 = vld [vmem:[%s715 + $0x28] sm:$0xf]
      %v2730 = vld [vmem:[%s715 + $0x30] sm:$0xf]
      %v2731 = vld [vmem:[%s715 + $0x38] sm:$0xf]
      %v2732 = vld [vmem:[%s5] sm:$0x3]
      %v2733 = vld [vmem:[%s6] sm:$0x1]
      %v2735 = vperm.slane %v2733, 0
      %v2745 = vunpack.c.l.b16 %v2724
      %v2746 = vunpack.c.l.b16 %v2725
      %v2747 = vunpack.c.l.b16 %v2726
      %v2748 = vunpack.c.l.b16 %v2727
      %v2749 = vunpack.c.l.b16 %v2728
      %v2750 = vunpack.c.l.b16 %v2729
      %v2751 = vunpack.c.l.b16 %v2730
      %v2752 = vunpack.c.l.b16 %v2731
      %v2753 = vpack.c.b16 %v2746, %v2745
      %v2754 = vpack.c.b16 %v2748, %v2747
      %v2755 = vpack.c.b16 %v2750, %v2749
      %v2756 = vpack.c.b16 %v2752, %v2751
      %v2758 = vsel %vm325, %v2753, 0
      %v2761 = vsel %vm325, %v2754, 0
      %v2764 = vsel %vm325, %v2755, 0
      %v2767 = vsel %vm325, %v2756, 0
      %v2770 = vsel %vm338, %v2732, 0
      %2772 = vmatpush.bf16.msra.mxu0 0
      %2773 = vmatpush.bf16.msra.mxu0 0
      %2774 = vmatpush.bf16.msra.mxu0 0
      %2775 = vmatpush.bf16.msra.mxu0 0
      %2776 = vmatpush.bf16.msra.mxu0 0
      %2777 = vmatpush.bf16.msra.mxu0 0
      %2778 = vmatpush.bf16.msra.mxu0 0
      %2779 = vmatpush.bf16.msra.mxu0 %v2770
      %2780 = vmatmul.bf16.gmra.mxu0 %v2758
      %v2781 = vpop.f32.mrf.mxu0
      %v2782 = vadd.f32 %v2735, %v2781
      %v2783 = vpop.f32.mrf.mxu0
      %v2784 = vadd.f32 %v2735, %v2783
      %2785 = vmatmul.bf16.gmra.mxu0 %v2761
      %v2786 = vpop.f32.mrf.mxu0
      %v2787 = vadd.f32 %v2735, %v2786
      %v2788 = vpop.f32.mrf.mxu0
      %v2789 = vadd.f32 %v2735, %v2788
      %2790 = vmatmul.bf16.gmra.mxu0 %v2764
      %v2791 = vpop.f32.mrf.mxu0
      %v2792 = vadd.f32 %v2735, %v2791
      %v2793 = vpop.f32.mrf.mxu0
      %v2794 = vadd.f32 %v2735, %v2793
      %2795 = vmatmul.bf16.gmra.mxu0 %v2767
      %v2796 = vpop.f32.mrf.mxu0
      %v2797 = vadd.f32 %v2735, %v2796
      %v2798 = vpop.f32.mrf.mxu0
      %v2799 = vadd.f32 %v2735, %v2798
      %2800 = vdwg.mxu0
      %v2801 = vadd.f32 %v2716, %v2782
      %v2802 = vadd.f32 %v2717, %v2784
      %v2803 = vadd.f32 %v2718, %v2787
      %v2804 = vadd.f32 %v2719, %v2789
      %v2805 = vadd.f32 %v2720, %v2792
      %v2806 = vadd.f32 %v2721, %v2794
      %v2807 = vadd.f32 %v2722, %v2797
      %v2808 = vadd.f32 %v2723, %v2799
      %v2809 = vmax.f32 %v2801, 0.0
      %v2810 = vmax.f32 %v2802, 0.0
      %v2811 = vmax.f32 %v2803, 0.0
      %v2812 = vmax.f32 %v2804, 0.0
      %v2813 = vmax.f32 %v2805, 0.0
      %v2814 = vmax.f32 %v2806, 0.0
      %v2815 = vmax.f32 %v2807, 0.0
      %v2816 = vmax.f32 %v2808, 0.0
      %2817 = vst.msk [vmem:[%s283] sm:$0xff] %vm1680, %v2809
      %2818 = vst.msk [vmem:[%s283 + $0x8] sm:$0xff] %vm1680, %v2810
      %2819 = vst.msk [vmem:[%s283 + $0x10] sm:$0xff] %vm1680, %v2811
      %2820 = vst.msk [vmem:[%s283 + $0x18] sm:$0xff] %vm1680, %v2812
      %2821 = vst.msk [vmem:[%s283 + $0x20] sm:$0xff] %vm1680, %v2813
      %2822 = vst.msk [vmem:[%s283 + $0x28] sm:$0xff] %vm1680, %v2814
      %2823 = vst.msk [vmem:[%s283 + $0x30] sm:$0xff] %vm1680, %v2815
      %2824 = vst.msk [vmem:[%s283 + $0x38] sm:$0xff] %vm1680, %v2816
      %p2825 = scmp.lt.s32.totalorder %s18, 1
      %s2826 = scalar_select %p2825, %s18, 1
      %s2827 = smul.addr %s2826, 8
      %s2828 = smul.addr %s2827, 8
      %s2829 = scalar_lea.vmem %s7, %s2828
      // Predicated region
      $region49: #{basic_block_forward.1} parent=47 // pred_check
        %p2830 = pneg %p188
      $region50: #{basic_block_forward.1} parent=47 // pred_check_branch
        %2832 = sbr.rel (%p2830) target = $region52
      $region51: #{basic_block_forward.1} parent=47 // pred_region
        _
      $region52: #{basic_block_forward.1} parent=47 // pred_fallthru
        _
    $region48: #{basic_block_forward.1} parent=5 // pred_fallthru
      _
    %p2833 = scmp.le.s32.totalorder 2, %s13
    // Predicated region
    $region53: #{basic_block_forward.1} parent=5 // pred_check
      %p2834 = pneg %p2833
    $region54: #{basic_block_forward.1} parent=5 // pred_check_branch
      %2836 = sbr.rel (%p2834) target = $region56
    $region55: #{basic_block_forward.1} parent=5 // pred_region
      %s2837 = ssub.s32 %s13, 2
      // Predicated region
      $region57: #{basic_block_forward.1} parent=55 // pred_check
        %p2838 = pneg %p194
      $region58: #{basic_block_forward.1} parent=55 // pred_check_branch
        %2840 = sbr.rel (%p2838) target = $region60
      $region59: #{basic_block_forward.1} parent=55 // pred_region
        %p2841 = scmp.lt.s32.totalorder %s19, 1
        %s2842 = scalar_select %p2841, %s19, 1
        %s2843 = smul.addr %s2842, 8
        %s2844 = smul.addr %s2843, 8
        %s2845 = scalar_lea.vmem %s7, %s2844
      $region60: #{basic_block_forward.1} parent=55 // pred_fallthru
        _
    $region56: #{basic_block_forward.1} parent=5 // pred_fallthru
      _
  $region6: #{basic_block_forward.1} parent=0 // loop_footer
    %s17 = sadd.s32 1, %s13
  $region7: #{basic_block_forward.1} parent=0 // loop_footer_branch
    %12 = sbr.rel target = $region3
  $region8: #{basic_block_forward.1} parent=0 // loop_exit
    _

</llo_original>
